<compile_context>
chip_gen: v7x
topology: tpu7x:2x2x1
jax: 0.10.0
libtpu: 0.0.40
codegen_flags: <defaults>
</compile_context>

<pallas_src>
import math

import jax
import jax.numpy as jnp
from jax.experimental import pallas as pl
from jax.experimental.pallas import tpu as pltpu

# ---------------- synthetic "bert-base" config (small) ----------------
HIDDEN = 32
N_HEADS = 2
HEAD_DIM = HIDDEN // N_HEADS
INTERMEDIATE = 64
N_LAYERS = 2
VOCAB = 100
MAX_POS = 16
TYPE_VOCAB = 2
LN_EPS = 1e-12
HEAD_PAD = 128  # classifier output padded to a full lane-dense 128-wide slab


# ---------------- in-kernel math helpers (f32 elementwise; v5e-safe) ----------------
def _layernorm(x, gamma, beta):
    mu = jnp.mean(x, axis=-1, keepdims=True)
    var = jnp.mean((x - mu) ** 2, axis=-1, keepdims=True)
    return (x - mu) * jax.lax.rsqrt(var + LN_EPS) * gamma + beta


def _gelu(x):
    # tanh-approximate GELU (EUP-friendly).  # TODO(synk): exact erf-GELU like HF BERT.
    c = math.sqrt(2.0 / math.pi)
    return 0.5 * x * (1.0 + jnp.tanh(c * (x + 0.044715 * x * x * x)))


# ---------------- fused forward kernel: grid = (batch_tiles, layers) ----------------
def fused_bert_kernel(
    emb_ref, mask_ref,                    # [Bblk,S,H] f32, [Bblk,1,S] f32
    embg_ref, embb_ref,                   # [1,H], [1,H]
    wqkv_ref, bqkv_ref,                   # [1,H,3H] bf16, [1,1,3H] f32
    wo_ref, bo_ref,                       # [1,H,H]  bf16, [1,1,H]  f32
    ln1g_ref, ln1b_ref,                   # [1,1,H], [1,1,H]
    w1_ref, b1_ref,                       # [1,H,I]  bf16, [1,1,I]  f32
    w2_ref, b2_ref,                       # [1,I,H]  bf16, [1,1,H]  f32
    ln2g_ref, ln2b_ref,                   # [1,1,H], [1,1,H]
    wcls_ref, bcls_ref,                   # [H,P] bf16, [1,P] f32
    logits_ref,                           # [Bblk,P] f32
    x_scr, ctx_scr,                       # VMEM [Bblk*S,H] f32 (carry / ctx assembly)
):
    l = pl.program_id(1)
    Bblk, S, H = emb_ref.shape
    N = Bblk * S

    # --- embedding LayerNorm: initialize the carried activation at the first layer ---
    @pl.when(l == 0)
    def _():
        emb = emb_ref[...].reshape(N, H).astype(jnp.float32)
        x_scr[...] = _layernorm(emb, embg_ref[...], embb_ref[...])

    x = x_scr[...]                                                   # [N, H] f32

    # additive attention bias over keys, built in-kernel: (1 - mask) * -10000
    bias = (1.0 - mask_ref[...].astype(jnp.float32)) * -10000.0     # [Bblk, 1, S]

    # ---- multi-head self-attention: fused QKV projection (bf16 MXU, f32 acc) ----
    qkv = (jnp.dot(x.astype(jnp.bfloat16), wqkv_ref[0],
                   preferred_element_type=jnp.float32) + bqkv_ref[0])  # [N, 3H] f32
    qkv3 = qkv.reshape(Bblk, S, 3 * H)

    scale = 1.0 / math.sqrt(HEAD_DIM)
    for h in range(N_HEADS):                       # static head loop, batched over Bblk
        q = qkv3[:, :, h * HEAD_DIM:(h + 1) * HEAD_DIM].astype(jnp.bfloat16)
        k = qkv3[:, :, H + h * HEAD_DIM:H + (h + 1) * HEAD_DIM].astype(jnp.bfloat16)
        v = qkv3[:, :, 2 * H + h * HEAD_DIM:2 * H + (h + 1) * HEAD_DIM].astype(jnp.bfloat16)
        # contract last dims directly — no k.T transpose
        s = jnp.einsum('bqd,bkd->bqk', q, k,
                       preferred_element_type=jnp.float32) * scale + bias   # [Bblk,S,S]
        s = s - jnp.max(s, axis=-1, keepdims=True)
        p = jnp.exp(s)
        p = p * pl.reciprocal(jnp.sum(p, axis=-1, keepdims=True), approx=True)
        ctx_h = jnp.einsum('bqk,bkd->bqd', p.astype(jnp.bfloat16), v,
                           preferred_element_type=jnp.float32)              # [Bblk,S,HD]
        # assemble per-head context in VMEM scratch (no lane-axis concatenate)
        ctx_scr[:, h * HEAD_DIM:(h + 1) * HEAD_DIM] = ctx_h.reshape(N, HEAD_DIM)

    attn = (jnp.dot(ctx_scr[...].astype(jnp.bfloat16), wo_ref[0],
                    preferred_element_type=jnp.float32) + bo_ref[0])        # [N, H]
    h1 = _layernorm(x + attn, ln1g_ref[0], ln1b_ref[0])

    # ---- FFN ----
    mid = _gelu(jnp.dot(h1.astype(jnp.bfloat16), w1_ref[0],
                        preferred_element_type=jnp.float32) + b1_ref[0])
    ffn = (jnp.dot(mid.astype(jnp.bfloat16), w2_ref[0],
                   preferred_element_type=jnp.float32) + b2_ref[0])
    x_new = _layernorm(h1 + ffn, ln2g_ref[0], ln2b_ref[0])
    x_scr[...] = x_new                                               # carry to layer l+1

    # ---- after the last layer: CLS tokens -> merged lane-dense classifier slab ----
    @pl.when(l == N_LAYERS - 1)
    def _():
        cls = x_new.reshape(Bblk, S, H)[:, 0, :]                     # [Bblk, H]
        logits = (jnp.dot(cls.astype(jnp.bfloat16), wcls_ref[...],
                          preferred_element_type=jnp.float32) + bcls_ref[...])
        logits_ref[...] = logits.astype(logits_ref.dtype)            # one 128-lane store


# ---------------- parameter init (deterministic, synthetic) ----------------
def init_params(key, num_labels_per_component):
    keys = iter(jax.random.split(key, 128))

    def nrm(shape, scale=0.02):
        return scale * jax.random.normal(next(keys), shape, jnp.float32)

    L, H, I = N_LAYERS, HIDDEN, INTERMEDIATE
    params = {
        "word_emb": nrm((VOCAB, H)),
        "pos_emb": nrm((MAX_POS, H)),
        "type_emb": nrm((TYPE_VOCAB, H)),
        "emb_ln_g": jnp.ones((1, H), jnp.float32),
        "emb_ln_b": jnp.zeros((1, H), jnp.float32),
        # per-layer weights stacked on a leading [N_LAYERS, ...] axis; matmul weights
        # are bf16 (MXU-native), biases / LayerNorm params stay f32.
        "wqkv": nrm((L, H, 3 * H)).astype(jnp.bfloat16),
        "bqkv": jnp.zeros((L, 1, 3 * H), jnp.float32),
        "wo": nrm((L, H, H)).astype(jnp.bfloat16),
        "bo": jnp.zeros((L, 1, H), jnp.float32),
        "ln1_g": jnp.ones((L, 1, H), jnp.float32),
        "ln1_b": jnp.zeros((L, 1, H), jnp.float32),
        "w1": nrm((L, H, I)).astype(jnp.bfloat16),
        "b1": jnp.zeros((L, 1, I), jnp.float32),
        "w2": nrm((L, I, H)).astype(jnp.bfloat16),
        "b2": jnp.zeros((L, 1, H), jnp.float32),
        "ln2_g": jnp.ones((L, 1, H), jnp.float32),
        "ln2_b": jnp.zeros((L, 1, H), jnp.float32),
    }
    # classifier heads merged into one lane-dense, zero-padded [H, 128] weight
    total = sum(num_labels_per_component)
    pad = max(HEAD_PAD, ((total + 127) // 128) * 128)
    head_ws = [nrm((H, n)) for n in num_labels_per_component]
    cls_w = jnp.zeros((H, pad), jnp.float32).at[:, :total].set(
        jnp.concatenate(head_ws, axis=1))
    params["cls_w"] = cls_w.astype(jnp.bfloat16)
    params["cls_b"] = jnp.zeros((1, pad), jnp.float32)
    return params


# ---------------- forward pass (one pallas_call for the whole model) ----------------
def bert_address_parser(params, input_ids, attention_mask, num_labels_per_component):
    B, S = input_ids.shape

    # embeddings (gather is JAX glue; its LayerNorm runs inside the fused kernel)
    # TODO(synk): at real sizes, pull the gather in-kernel via PrefetchScalarGridSpec +
    # pl.Element row-gather BlockSpecs on the embedding tables.
    pos_ids = jnp.arange(S, dtype=jnp.int32)
    emb = (params["word_emb"][input_ids]
           + params["pos_emb"][pos_ids][None, :, :]
           + params["type_emb"][jnp.zeros((B, S), jnp.int32)])          # [B,S,H] f32
    mask = attention_mask.astype(jnp.float32).reshape(B, 1, S)          # [B,1,S]

    P = params["cls_w"].shape[1]

    # whole batch in one tile at this size (B=2); for larger B pick a tile and mark
    # the batch-tile axis pltpu.CORE_PARALLEL on v7x once per-core work >> step cost.
    BBLK = B
    num_btiles = B // BBLK

    def lyr(shape):   # per-layer weight: block indexed by the layer grid axis
        nd = len(shape)
        return pl.BlockSpec((1,) + shape[1:], lambda bt, l, nd=nd: (l,) + (0,) * (nd - 1))

    def const(shape):  # shared weight: same block every step (fetched once)
        nd = len(shape)
        return pl.BlockSpec(shape, lambda bt, l, nd=nd: (0,) * nd)

    weights = [
        params["emb_ln_g"], params["emb_ln_b"],
        params["wqkv"], params["bqkv"], params["wo"], params["bo"],
        params["ln1_g"], params["ln1_b"],
        params["w1"], params["b1"], params["w2"], params["b2"],
        params["ln2_g"], params["ln2_b"],
        params["cls_w"], params["cls_b"],
    ]
    weight_specs = (
        [const(params["emb_ln_g"].shape), const(params["emb_ln_b"].shape)]
        + [lyr(params[n].shape) for n in
           ("wqkv", "bqkv", "wo", "bo", "ln1_g", "ln1_b",
            "w1", "b1", "w2", "b2", "ln2_g", "ln2_b")]
        + [const(params["cls_w"].shape), const(params["cls_b"].shape)]
    )

    out = pl.pallas_call(
        fused_bert_kernel,
        grid=(num_btiles, N_LAYERS),                       # layer (reduction-like) axis last
        in_specs=[pl.BlockSpec((BBLK, S, HIDDEN), lambda bt, l: (bt, 0, 0)),
                  pl.BlockSpec((BBLK, 1, S), lambda bt, l: (bt, 0, 0))]
                 + weight_specs,
        out_specs=pl.BlockSpec((BBLK, P), lambda bt, l: (bt, 0)),
        out_shape=jax.ShapeDtypeStruct((B, P), jnp.float32),
        scratch_shapes=[pltpu.VMEM((BBLK * S, HIDDEN), jnp.float32),   # activation carry
                        pltpu.VMEM((BBLK * S, HIDDEN), jnp.float32)],  # per-head ctx slab
        compiler_params=pltpu.CompilerParams(
            dimension_semantics=("parallel", "arbitrary"),
            # explicit limit; re-derive residency against 64 MiB on v7x (128 MiB v5e/v6e)
            vmem_limit_bytes=32 * 1024 * 1024),
    )(emb, mask, *weights)

    # split the merged lane-dense logits slab back into per-component heads
    logits, off = [], 0
    for n in num_labels_per_component:
        logits.append(out[:, off:off + n])
        off += n
    return logits


if __name__ == "__main__":
    key = jax.random.PRNGKey(0)
    k_params, k_ids = jax.random.split(key)

    B, S = 2, 8
    num_labels_per_component = [5, 7, 3]

    params = init_params(k_params, num_labels_per_component)
    input_ids = jax.random.randint(k_ids, (B, S), 0, VOCAB, dtype=jnp.int32)
    attention_mask = jnp.ones((B, S), jnp.int32).at[1, 6:].set(0)  # pad tail of sample 1

    logits = bert_address_parser(params, input_ids, attention_mask,
                                 num_labels_per_component)
    for lg in logits:
        jax.block_until_ready(lg)
    assert [tuple(lg.shape) for lg in logits] == [(B, n) for n in num_labels_per_component]
    print("KERNEL_OK")
</pallas_src>

<mosaic_0001>
module attributes {stable_mosaic.version = 11 : i64} {
  func.func @fused_bert_kernel(%arg0: i32, %arg1: i32, %arg2: memref<2x8x32xf32, #tpu.memory_space<vmem>>, %arg3: memref<2x1x8xf32, #tpu.memory_space<vmem>>, %arg4: memref<1x32xf32, #tpu.memory_space<vmem>>, %arg5: memref<1x32xf32, #tpu.memory_space<vmem>>, %arg6: memref<1x32x96xbf16, #tpu.memory_space<vmem>>, %arg7: memref<1x1x96xf32, #tpu.memory_space<vmem>>, %arg8: memref<1x32x32xbf16, #tpu.memory_space<vmem>>, %arg9: memref<1x1x32xf32, #tpu.memory_space<vmem>>, %arg10: memref<1x1x32xf32, #tpu.memory_space<vmem>>, %arg11: memref<1x1x32xf32, #tpu.memory_space<vmem>>, %arg12: memref<1x32x64xbf16, #tpu.memory_space<vmem>>, %arg13: memref<1x1x64xf32, #tpu.memory_space<vmem>>, %arg14: memref<1x64x32xbf16, #tpu.memory_space<vmem>>, %arg15: memref<1x1x32xf32, #tpu.memory_space<vmem>>, %arg16: memref<1x1x32xf32, #tpu.memory_space<vmem>>, %arg17: memref<1x1x32xf32, #tpu.memory_space<vmem>>, %arg18: memref<32x128xbf16, #tpu.memory_space<vmem>>, %arg19: memref<1x128xf32, #tpu.memory_space<vmem>>, %arg20: memref<2x128xf32, #tpu.memory_space<vmem>>, %arg21: memref<16x32xf32, #tpu.memory_space<vmem>>, %arg22: memref<16x32xf32, #tpu.memory_space<vmem>>) attributes {dimension_semantics = [#tpu.dimension_semantics<parallel>, #tpu.dimension_semantics<arbitrary>], iteration_bounds = array<i64: 1, 2>, scalar_prefetch = 0 : i64, scratch_operands = 2 : i64, tpu.core_type = #tpu.core_type<tc>, window_params = [{transform_indices = @transform_0, window_bounds = array<i64: 2, 8, 32>}, {transform_indices = @transform_1, window_bounds = array<i64: 2, 1, 8>}, {pipeline_mode = #tpu.pipeline_mode<synchronous>, transform_indices = @transform_2, window_bounds = array<i64: 1, 32>}, {pipeline_mode = #tpu.pipeline_mode<synchronous>, transform_indices = @transform_3, window_bounds = array<i64: 1, 32>}, {transform_indices = @transform_4, window_bounds = array<i64: 1, 32, 96>}, {transform_indices = @transform_5, window_bounds = array<i64: 1, 1, 96>}, {transform_indices = @transform_6, window_bounds = array<i64: 1, 32, 32>}, {transform_indices = @transform_7, window_bounds = array<i64: 1, 1, 32>}, {transform_indices = @transform_8, window_bounds = array<i64: 1, 1, 32>}, {transform_indices = @transform_9, window_bounds = array<i64: 1, 1, 32>}, {transform_indices = @transform_10, window_bounds = array<i64: 1, 32, 64>}, {transform_indices = @transform_11, window_bounds = array<i64: 1, 1, 64>}, {transform_indices = @transform_12, window_bounds = array<i64: 1, 64, 32>}, {transform_indices = @transform_13, window_bounds = array<i64: 1, 1, 32>}, {transform_indices = @transform_14, window_bounds = array<i64: 1, 1, 32>}, {transform_indices = @transform_15, window_bounds = array<i64: 1, 1, 32>}, {pipeline_mode = #tpu.pipeline_mode<synchronous>, transform_indices = @transform_16, window_bounds = array<i64: 32, 128>}, {pipeline_mode = #tpu.pipeline_mode<synchronous>, transform_indices = @transform_17, window_bounds = array<i64: 1, 128>}, {transform_indices = @transform_18, window_bounds = array<i64: 2, 128>}]} {
    %c0_i32 = arith.constant 0 : i32
    %0 = arith.cmpi eq, %arg1, %c0_i32 : i32
    %1 = arith.extui %0 : i1 to i32
    %c0_i32_0 = arith.constant 0 : i32
    %2 = arith.cmpi ne, %1, %c0_i32_0 : i32
    scf.if %2 {
      %c0_78 = arith.constant 0 : index
      %c0_79 = arith.constant 0 : index
      %c0_80 = arith.constant 0 : index
      %164 = vector.load %arg2[%c0_78, %c0_79, %c0_80] : memref<2x8x32xf32, #tpu.memory_space<vmem>>, vector<2x8x32xf32>
      %165 = vector.shape_cast %164 : vector<2x8x32xf32> to vector<16x32xf32>
      %c0_81 = arith.constant 0 : index
      %c0_82 = arith.constant 0 : index
      %166 = vector.load %arg4[%c0_81, %c0_82] : memref<1x32xf32, #tpu.memory_space<vmem>>, vector<1x32xf32>
      %c0_83 = arith.constant 0 : index
      %c0_84 = arith.constant 0 : index
      %167 = vector.load %arg5[%c0_83, %c0_84] : memref<1x32xf32, #tpu.memory_space<vmem>>, vector<1x32xf32>
      %cst_85 = arith.constant dense<0.000000e+00> : vector<16xf32>
      %168 = vector.multi_reduction <add>, %165, %cst_85 [1] : vector<16x32xf32> to vector<16xf32>
      %169 = vector.shape_cast %168 : vector<16xf32> to vector<16x1xf32>
      %cst_86 = arith.constant 3.200000e+01 : f32
      %170 = vector.broadcast %cst_86 : f32 to vector<16x1xf32>
      %171 = arith.divf %169, %170 : vector<16x1xf32>
      %172 = vector.broadcast %171 : vector<16x1xf32> to vector<16x32xf32>
      %173 = arith.subf %165, %172 : vector<16x32xf32>
      %174 = arith.mulf %173, %173 : vector<16x32xf32>
      %cst_87 = arith.constant dense<0.000000e+00> : vector<16xf32>
      %175 = vector.multi_reduction <add>, %174, %cst_87 [1] : vector<16x32xf32> to vector<16xf32>
      %176 = vector.shape_cast %175 : vector<16xf32> to vector<16x1xf32>
      %cst_88 = arith.constant 3.200000e+01 : f32
      %177 = vector.broadcast %cst_88 : f32 to vector<16x1xf32>
      %178 = arith.divf %176, %177 : vector<16x1xf32>
      %179 = vector.broadcast %171 : vector<16x1xf32> to vector<16x32xf32>
      %180 = arith.subf %165, %179 : vector<16x32xf32>
      %cst_89 = arith.constant 9.99999996E-13 : f32
      %181 = vector.broadcast %cst_89 : f32 to vector<16x1xf32>
      %182 = arith.addf %178, %181 : vector<16x1xf32>
      %183 = math.rsqrt %182 : vector<16x1xf32>
      %184 = vector.broadcast %183 : vector<16x1xf32> to vector<16x32xf32>
      %185 = arith.mulf %180, %184 : vector<16x32xf32>
      %186 = vector.broadcast %166 : vector<1x32xf32> to vector<16x32xf32>
      %187 = arith.mulf %185, %186 : vector<16x32xf32>
      %188 = vector.broadcast %167 : vector<1x32xf32> to vector<16x32xf32>
      %189 = arith.addf %187, %188 : vector<16x32xf32>
      %c0_90 = arith.constant 0 : index
      %c0_91 = arith.constant 0 : index
      %190 = vector.load %arg21[%c0_90, %c0_91] : memref<16x32xf32, #tpu.memory_space<vmem>>, vector<16x32xf32>
      tpu.vector_store %arg21[%c0_90, %c0_91], %189 {strides = array<i32>} : memref<16x32xf32, #tpu.memory_space<vmem>>, vector<16x32xf32>,
    } else {
    }
    %c0 = arith.constant 0 : index
    %c0_1 = arith.constant 0 : index
    %3 = vector.load %arg21[%c0, %c0_1] : memref<16x32xf32, #tpu.memory_space<vmem>>, vector<16x32xf32>
    %c0_2 = arith.constant 0 : index
    %c0_3 = arith.constant 0 : index
    %c0_4 = arith.constant 0 : index
    %4 = vector.load %arg3[%c0_2, %c0_3, %c0_4] : memref<2x1x8xf32, #tpu.memory_space<vmem>>, vector<2x1x8xf32>
    %cst = arith.constant 1.000000e+00 : f32
    %5 = vector.broadcast %cst : f32 to vector<2x1x8xf32>
    %6 = arith.subf %5, %4 : vector<2x1x8xf32>
    %cst_5 = arith.constant -1.000000e+04 : f32
    %7 = vector.broadcast %cst_5 : f32 to vector<2x1x8xf32>
    %8 = arith.mulf %6, %7 : vector<2x1x8xf32>
    %9 = arith.truncf %3 : vector<16x32xf32> to vector<16x32xbf16>
    %c0_6 = arith.constant 0 : index
    %c0_7 = arith.constant 0 : index
    %c0_8 = arith.constant 0 : index
    %10 = vector.load %arg6[%c0_6, %c0_7, %c0_8] : memref<1x32x96xbf16, #tpu.memory_space<vmem>>, vector<1x32x96xbf16>
    %11 = vector.shape_cast %10 : vector<1x32x96xbf16> to vector<32x96xbf16>
    %cst_9 = arith.constant dense<0.000000e+00> : vector<16x96xf32>
    %12 = tpu.matmul %9, %11, %cst_9 {dimension_numbers = #tpu.dot_dimension_numbers<[1], [0], [0], [1], [0, 0, 1, 1], [], []>} : vector<16x32xbf16>, vector<32x96xbf16>, vector<16x96xf32> -> vector<16x96xf32>
    %c0_10 = arith.constant 0 : index
    %c0_11 = arith.constant 0 : index
    %c0_12 = arith.constant 0 : index
    %13 = vector.load %arg7[%c0_10, %c0_11, %c0_12] : memref<1x1x96xf32, #tpu.memory_space<vmem>>, vector<1x1x96xf32>
    %14 = vector.shape_cast %13 : vector<1x1x96xf32> to vector<1x96xf32>
    %15 = vector.broadcast %14 : vector<1x96xf32> to vector<16x96xf32>
    %16 = arith.addf %12, %15 : vector<16x96xf32>
    %17 = vector.shape_cast %16 : vector<16x96xf32> to vector<2x8x96xf32>
    %18 = vector.extract_strided_slice %17 {offsets = [0, 0, 0], sizes = [2, 8, 16], strides = [1, 1, 1]} : vector<2x8x96xf32> to vector<2x8x16xf32>
    %19 = arith.truncf %18 : vector<2x8x16xf32> to vector<2x8x16xbf16>
    %20 = vector.extract_strided_slice %17 {offsets = [0, 0, 32], sizes = [2, 8, 16], strides = [1, 1, 1]} : vector<2x8x96xf32> to vector<2x8x16xf32>
    %21 = arith.truncf %20 : vector<2x8x16xf32> to vector<2x8x16xbf16>
    %22 = vector.extract_strided_slice %17 {offsets = [0, 0, 64], sizes = [2, 8, 16], strides = [1, 1, 1]} : vector<2x8x96xf32> to vector<2x8x16xf32>
    %23 = arith.truncf %22 : vector<2x8x16xf32> to vector<2x8x16xbf16>
    "tpu.trace_start"() <{level = 10 : i32, message = "bqd,bkd->bqk"}> : () -> ()
    %cst_13 = arith.constant dense<0.000000e+00> : vector<2x8x8xf32>
    %24 = tpu.matmul %19, %21, %cst_13 {dimension_numbers = #tpu.dot_dimension_numbers<[2], [2], [1], [1], [0, 0, 0, 1, 1, 1], [0], [0]>} : vector<2x8x16xbf16>, vector<2x8x16xbf16>, vector<2x8x8xf32> -> vector<2x8x8xf32>
    "tpu.trace_stop"() : () -> ()
    %cst_14 = arith.constant 2.500000e-01 : f32
    %25 = vector.broadcast %cst_14 : f32 to vector<2x8x8xf32>
    %26 = arith.mulf %24, %25 : vector<2x8x8xf32>
    %27 = vector.broadcast %8 : vector<2x1x8xf32> to vector<2x8x8xf32>
    %28 = arith.addf %26, %27 : vector<2x8x8xf32>
    %cst_15 = arith.constant dense<0xFF800000> : vector<2x8xf32>
    %29 = vector.multi_reduction <maximumf>, %28, %cst_15 [2] : vector<2x8x8xf32> to vector<2x8xf32>
    %30 = vector.shape_cast %29 : vector<2x8xf32> to vector<2x8x1xf32>
    %31 = vector.broadcast %30 : vector<2x8x1xf32> to vector<2x8x8xf32>
    %32 = arith.subf %28, %31 : vector<2x8x8xf32>
    %33 = math.exp %32 : vector<2x8x8xf32>
    %cst_16 = arith.constant dense<0.000000e+00> : vector<2x8xf32>
    %34 = vector.multi_reduction <add>, %33, %cst_16 [2] : vector<2x8x8xf32> to vector<2x8xf32>
    %35 = vector.shape_cast %34 : vector<2x8xf32> to vector<2x8x1xf32>
    %36 = tpu.reciprocal %35 {approx = true} : vector<2x8x1xf32> -> vector<2x8x1xf32>
    %37 = vector.broadcast %36 : vector<2x8x1xf32> to vector<2x8x8xf32>
    %38 = arith.mulf %33, %37 : vector<2x8x8xf32>
    %39 = arith.truncf %38 : vector<2x8x8xf32> to vector<2x8x8xbf16>
    "tpu.trace_start"() <{level = 10 : i32, message = "bqk,bkd->bqd"}> : () -> ()
    %cst_17 = arith.constant dense<0.000000e+00> : vector<2x8x16xf32>
    %40 = tpu.matmul %39, %23, %cst_17 {dimension_numbers = #tpu.dot_dimension_numbers<[2], [1], [1], [2], [0, 0, 0, 1, 1, 2], [0], [0]>} : vector<2x8x8xbf16>, vector<2x8x16xbf16>, vector<2x8x16xf32> -> vector<2x8x16xf32>
    "tpu.trace_stop"() : () -> ()
    %41 = vector.shape_cast %40 : vector<2x8x16xf32> to vector<16x16xf32>
    %c0_18 = arith.constant 0 : index
    %c0_19 = arith.constant 0 : index
    %42 = vector.load %arg22[%c0_18, %c0_19] : memref<16x32xf32, #tpu.memory_space<vmem>>, vector<16x16xf32>
    tpu.vector_store %arg22[%c0_18, %c0_19], %41 {strides = array<i32>} : memref<16x32xf32, #tpu.memory_space<vmem>>, vector<16x16xf32>,
    %43 = vector.extract_strided_slice %17 {offsets = [0, 0, 16], sizes = [2, 8, 16], strides = [1, 1, 1]} : vector<2x8x96xf32> to vector<2x8x16xf32>
    %44 = arith.truncf %43 : vector<2x8x16xf32> to vector<2x8x16xbf16>
    %45 = vector.extract_strided_slice %17 {offsets = [0, 0, 48], sizes = [2, 8, 16], strides = [1, 1, 1]} : vector<2x8x96xf32> to vector<2x8x16xf32>
    %46 = arith.truncf %45 : vector<2x8x16xf32> to vector<2x8x16xbf16>
    %47 = vector.extract_strided_slice %17 {offsets = [0, 0, 80], sizes = [2, 8, 16], strides = [1, 1, 1]} : vector<2x8x96xf32> to vector<2x8x16xf32>
    %48 = arith.truncf %47 : vector<2x8x16xf32> to vector<2x8x16xbf16>
    "tpu.trace_start"() <{level = 10 : i32, message = "bqd,bkd->bqk"}> : () -> ()
    %cst_20 = arith.constant dense<0.000000e+00> : vector<2x8x8xf32>
    %49 = tpu.matmul %44, %46, %cst_20 {dimension_numbers = #tpu.dot_dimension_numbers<[2], [2], [1], [1], [0, 0, 0, 1, 1, 1], [0], [0]>} : vector<2x8x16xbf16>, vector<2x8x16xbf16>, vector<2x8x8xf32> -> vector<2x8x8xf32>
    "tpu.trace_stop"() : () -> ()
    %cst_21 = arith.constant 2.500000e-01 : f32
    %50 = vector.broadcast %cst_21 : f32 to vector<2x8x8xf32>
    %51 = arith.mulf %49, %50 : vector<2x8x8xf32>
    %52 = vector.broadcast %8 : vector<2x1x8xf32> to vector<2x8x8xf32>
    %53 = arith.addf %51, %52 : vector<2x8x8xf32>
    %cst_22 = arith.constant dense<0xFF800000> : vector<2x8xf32>
    %54 = vector.multi_reduction <maximumf>, %53, %cst_22 [2] : vector<2x8x8xf32> to vector<2x8xf32>
    %55 = vector.shape_cast %54 : vector<2x8xf32> to vector<2x8x1xf32>
    %56 = vector.broadcast %55 : vector<2x8x1xf32> to vector<2x8x8xf32>
    %57 = arith.subf %53, %56 : vector<2x8x8xf32>
    %58 = math.exp %57 : vector<2x8x8xf32>
    %cst_23 = arith.constant dense<0.000000e+00> : vector<2x8xf32>
    %59 = vector.multi_reduction <add>, %58, %cst_23 [2] : vector<2x8x8xf32> to vector<2x8xf32>
    %60 = vector.shape_cast %59 : vector<2x8xf32> to vector<2x8x1xf32>
    %61 = tpu.reciprocal %60 {approx = true} : vector<2x8x1xf32> -> vector<2x8x1xf32>
    %62 = vector.broadcast %61 : vector<2x8x1xf32> to vector<2x8x8xf32>
    %63 = arith.mulf %58, %62 : vector<2x8x8xf32>
    %64 = arith.truncf %63 : vector<2x8x8xf32> to vector<2x8x8xbf16>
    "tpu.trace_start"() <{level = 10 : i32, message = "bqk,bkd->bqd"}> : () -> ()
    %cst_24 = arith.constant dense<0.000000e+00> : vector<2x8x16xf32>
    %65 = tpu.matmul %64, %48, %cst_24 {dimension_numbers = #tpu.dot_dimension_numbers<[2], [1], [1], [2], [0, 0, 0, 1, 1, 2], [0], [0]>} : vector<2x8x8xbf16>, vector<2x8x16xbf16>, vector<2x8x16xf32> -> vector<2x8x16xf32>
    "tpu.trace_stop"() : () -> ()
    %66 = vector.shape_cast %65 : vector<2x8x16xf32> to vector<16x16xf32>
    %c0_25 = arith.constant 0 : index
    %c16 = arith.constant 16 : index
    %67 = vector.load %arg22[%c0_25, %c16] : memref<16x32xf32, #tpu.memory_space<vmem>>, vector<16x16xf32>
    tpu.vector_store %arg22[%c0_25, %c16], %66 {strides = array<i32>} : memref<16x32xf32, #tpu.memory_space<vmem>>, vector<16x16xf32>,
    %c0_26 = arith.constant 0 : index
    %c0_27 = arith.constant 0 : index
    %68 = vector.load %arg22[%c0_26, %c0_27] : memref<16x32xf32, #tpu.memory_space<vmem>>, vector<16x32xf32>
    %69 = arith.truncf %68 : vector<16x32xf32> to vector<16x32xbf16>
    %c0_28 = arith.constant 0 : index
    %c0_29 = arith.constant 0 : index
    %c0_30 = arith.constant 0 : index
    %70 = vector.load %arg8[%c0_28, %c0_29, %c0_30] : memref<1x32x32xbf16, #tpu.memory_space<vmem>>, vector<1x32x32xbf16>
    %71 = vector.shape_cast %70 : vector<1x32x32xbf16> to vector<32x32xbf16>
    %cst_31 = arith.constant dense<0.000000e+00> : vector<16x32xf32>
    %72 = tpu.matmul %69, %71, %cst_31 {dimension_numbers = #tpu.dot_dimension_numbers<[1], [0], [0], [1], [0, 0, 1, 1], [], []>} : vector<16x32xbf16>, vector<32x32xbf16>, vector<16x32xf32> -> vector<16x32xf32>
    %c0_32 = arith.constant 0 : index
    %c0_33 = arith.constant 0 : index
    %c0_34 = arith.constant 0 : index
    %73 = vector.load %arg9[%c0_32, %c0_33, %c0_34] : memref<1x1x32xf32, #tpu.memory_space<vmem>>, vector<1x1x32xf32>
    %74 = vector.shape_cast %73 : vector<1x1x32xf32> to vector<1x32xf32>
    %75 = vector.broadcast %74 : vector<1x32xf32> to vector<16x32xf32>
    %76 = arith.addf %72, %75 : vector<16x32xf32>
    %77 = arith.addf %3, %76 : vector<16x32xf32>
    %c0_35 = arith.constant 0 : index
    %c0_36 = arith.constant 0 : index
    %c0_37 = arith.constant 0 : index
    %78 = vector.load %arg10[%c0_35, %c0_36, %c0_37] : memref<1x1x32xf32, #tpu.memory_space<vmem>>, vector<1x1x32xf32>
    %79 = vector.shape_cast %78 : vector<1x1x32xf32> to vector<1x32xf32>
    %c0_38 = arith.constant 0 : index
    %c0_39 = arith.constant 0 : index
    %c0_40 = arith.constant 0 : index
    %80 = vector.load %arg11[%c0_38, %c0_39, %c0_40] : memref<1x1x32xf32, #tpu.memory_space<vmem>>, vector<1x1x32xf32>
    %81 = vector.shape_cast %80 : vector<1x1x32xf32> to vector<1x32xf32>
    %cst_41 = arith.constant dense<0.000000e+00> : vector<16xf32>
    %82 = vector.multi_reduction <add>, %77, %cst_41 [1] : vector<16x32xf32> to vector<16xf32>
    %83 = vector.shape_cast %82 : vector<16xf32> to vector<16x1xf32>
    %cst_42 = arith.constant 3.200000e+01 : f32
    %84 = vector.broadcast %cst_42 : f32 to vector<16x1xf32>
    %85 = arith.divf %83, %84 : vector<16x1xf32>
    %86 = vector.broadcast %85 : vector<16x1xf32> to vector<16x32xf32>
    %87 = arith.subf %77, %86 : vector<16x32xf32>
    %88 = arith.mulf %87, %87 : vector<16x32xf32>
    %cst_43 = arith.constant dense<0.000000e+00> : vector<16xf32>
    %89 = vector.multi_reduction <add>, %88, %cst_43 [1] : vector<16x32xf32> to vector<16xf32>
    %90 = vector.shape_cast %89 : vector<16xf32> to vector<16x1xf32>
    %cst_44 = arith.constant 3.200000e+01 : f32
    %91 = vector.broadcast %cst_44 : f32 to vector<16x1xf32>
    %92 = arith.divf %90, %91 : vector<16x1xf32>
    %93 = vector.broadcast %85 : vector<16x1xf32> to vector<16x32xf32>
    %94 = arith.subf %77, %93 : vector<16x32xf32>
    %cst_45 = arith.constant 9.99999996E-13 : f32
    %95 = vector.broadcast %cst_45 : f32 to vector<16x1xf32>
    %96 = arith.addf %92, %95 : vector<16x1xf32>
    %97 = math.rsqrt %96 : vector<16x1xf32>
    %98 = vector.broadcast %97 : vector<16x1xf32> to vector<16x32xf32>
    %99 = arith.mulf %94, %98 : vector<16x32xf32>
    %100 = vector.broadcast %79 : vector<1x32xf32> to vector<16x32xf32>
    %101 = arith.mulf %99, %100 : vector<16x32xf32>
    %102 = vector.broadcast %81 : vector<1x32xf32> to vector<16x32xf32>
    %103 = arith.addf %101, %102 : vector<16x32xf32>
    %104 = arith.truncf %103 : vector<16x32xf32> to vector<16x32xbf16>
    %c0_46 = arith.constant 0 : index
    %c0_47 = arith.constant 0 : index
    %c0_48 = arith.constant 0 : index
    %105 = vector.load %arg12[%c0_46, %c0_47, %c0_48] : memref<1x32x64xbf16, #tpu.memory_space<vmem>>, vector<1x32x64xbf16>
    %106 = vector.shape_cast %105 : vector<1x32x64xbf16> to vector<32x64xbf16>
    %cst_49 = arith.constant dense<0.000000e+00> : vector<16x64xf32>
    %107 = tpu.matmul %104, %106, %cst_49 {dimension_numbers = #tpu.dot_dimension_numbers<[1], [0], [0], [1], [0, 0, 1, 1], [], []>} : vector<16x32xbf16>, vector<32x64xbf16>, vector<16x64xf32> -> vector<16x64xf32>
    %c0_50 = arith.constant 0 : index
    %c0_51 = arith.constant 0 : index
    %c0_52 = arith.constant 0 : index
    %108 = vector.load %arg13[%c0_50, %c0_51, %c0_52] : memref<1x1x64xf32, #tpu.memory_space<vmem>>, vector<1x1x64xf32>
    %109 = vector.shape_cast %108 : vector<1x1x64xf32> to vector<1x64xf32>
    %110 = vector.broadcast %109 : vector<1x64xf32> to vector<16x64xf32>
    %111 = arith.addf %107, %110 : vector<16x64xf32>
    %cst_53 = arith.constant 5.000000e-01 : f32
    %112 = vector.broadcast %cst_53 : f32 to vector<16x64xf32>
    %113 = arith.mulf %112, %111 : vector<16x64xf32>
    %cst_54 = arith.constant 4.471500e-02 : f32
    %114 = vector.broadcast %cst_54 : f32 to vector<16x64xf32>
    %115 = arith.mulf %114, %111 : vector<16x64xf32>
    %116 = arith.mulf %115, %111 : vector<16x64xf32>
    %117 = arith.mulf %116, %111 : vector<16x64xf32>
    %118 = arith.addf %111, %117 : vector<16x64xf32>
    %cst_55 = arith.constant 0.797884583 : f32
    %119 = vector.broadcast %cst_55 : f32 to vector<16x64xf32>
    %120 = arith.mulf %119, %118 : vector<16x64xf32>
    %121 = math.tanh %120 : vector<16x64xf32>
    %cst_56 = arith.constant 1.000000e+00 : f32
    %122 = vector.broadcast %cst_56 : f32 to vector<16x64xf32>
    %123 = arith.addf %122, %121 : vector<16x64xf32>
    %124 = arith.mulf %113, %123 : vector<16x64xf32>
    %125 = arith.truncf %124 : vector<16x64xf32> to vector<16x64xbf16>
    %c0_57 = arith.constant 0 : index
    %c0_58 = arith.constant 0 : index
    %c0_59 = arith.constant 0 : index
    %126 = vector.load %arg14[%c0_57, %c0_58, %c0_59] : memref<1x64x32xbf16, #tpu.memory_space<vmem>>, vector<1x64x32xbf16>
    %127 = vector.shape_cast %126 : vector<1x64x32xbf16> to vector<64x32xbf16>
    %cst_60 = arith.constant dense<0.000000e+00> : vector<16x32xf32>
    %128 = tpu.matmul %125, %127, %cst_60 {dimension_numbers = #tpu.dot_dimension_numbers<[1], [0], [0], [1], [0, 0, 1, 1], [], []>} : vector<16x64xbf16>, vector<64x32xbf16>, vector<16x32xf32> -> vector<16x32xf32>
    %c0_61 = arith.constant 0 : index
    %c0_62 = arith.constant 0 : index
    %c0_63 = arith.constant 0 : index
    %129 = vector.load %arg15[%c0_61, %c0_62, %c0_63] : memref<1x1x32xf32, #tpu.memory_space<vmem>>, vector<1x1x32xf32>
    %130 = vector.shape_cast %129 : vector<1x1x32xf32> to vector<1x32xf32>
    %131 = vector.broadcast %130 : vector<1x32xf32> to vector<16x32xf32>
    %132 = arith.addf %128, %131 : vector<16x32xf32>
    %133 = arith.addf %103, %132 : vector<16x32xf32>
    %c0_64 = arith.constant 0 : index
    %c0_65 = arith.constant 0 : index
    %c0_66 = arith.constant 0 : index
    %134 = vector.load %arg16[%c0_64, %c0_65, %c0_66] : memref<1x1x32xf32, #tpu.memory_space<vmem>>, vector<1x1x32xf32>
    %135 = vector.shape_cast %134 : vector<1x1x32xf32> to vector<1x32xf32>
    %c0_67 = arith.constant 0 : index
    %c0_68 = arith.constant 0 : index
    %c0_69 = arith.constant 0 : index
    %136 = vector.load %arg17[%c0_67, %c0_68, %c0_69] : memref<1x1x32xf32, #tpu.memory_space<vmem>>, vector<1x1x32xf32>
    %137 = vector.shape_cast %136 : vector<1x1x32xf32> to vector<1x32xf32>
    %cst_70 = arith.constant dense<0.000000e+00> : vector<16xf32>
    %138 = vector.multi_reduction <add>, %133, %cst_70 [1] : vector<16x32xf32> to vector<16xf32>
    %139 = vector.shape_cast %138 : vector<16xf32> to vector<16x1xf32>
    %cst_71 = arith.constant 3.200000e+01 : f32
    %140 = vector.broadcast %cst_71 : f32 to vector<16x1xf32>
    %141 = arith.divf %139, %140 : vector<16x1xf32>
    %142 = vector.broadcast %141 : vector<16x1xf32> to vector<16x32xf32>
    %143 = arith.subf %133, %142 : vector<16x32xf32>
    %144 = arith.mulf %143, %143 : vector<16x32xf32>
    %cst_72 = arith.constant dense<0.000000e+00> : vector<16xf32>
    %145 = vector.multi_reduction <add>, %144, %cst_72 [1] : vector<16x32xf32> to vector<16xf32>
    %146 = vector.shape_cast %145 : vector<16xf32> to vector<16x1xf32>
    %cst_73 = arith.constant 3.200000e+01 : f32
    %147 = vector.broadcast %cst_73 : f32 to vector<16x1xf32>
    %148 = arith.divf %146, %147 : vector<16x1xf32>
    %149 = vector.broadcast %141 : vector<16x1xf32> to vector<16x32xf32>
    %150 = arith.subf %133, %149 : vector<16x32xf32>
    %cst_74 = arith.constant 9.99999996E-13 : f32
    %151 = vector.broadcast %cst_74 : f32 to vector<16x1xf32>
    %152 = arith.addf %148, %151 : vector<16x1xf32>
    %153 = math.rsqrt %152 : vector<16x1xf32>
    %154 = vector.broadcast %153 : vector<16x1xf32> to vector<16x32xf32>
    %155 = arith.mulf %150, %154 : vector<16x32xf32>
    %156 = vector.broadcast %135 : vector<1x32xf32> to vector<16x32xf32>
    %157 = arith.mulf %155, %156 : vector<16x32xf32>
    %158 = vector.broadcast %137 : vector<1x32xf32> to vector<16x32xf32>
    %159 = arith.addf %157, %158 : vector<16x32xf32>
    %c0_75 = arith.constant 0 : index
    %c0_76 = arith.constant 0 : index
    %160 = vector.load %arg21[%c0_75, %c0_76] : memref<16x32xf32, #tpu.memory_space<vmem>>, vector<16x32xf32>
    tpu.vector_store %arg21[%c0_75, %c0_76], %159 {strides = array<i32>} : memref<16x32xf32, #tpu.memory_space<vmem>>, vector<16x32xf32>,
    %c1_i32 = arith.constant 1 : i32
    %161 = arith.cmpi eq, %arg1, %c1_i32 : i32
    %162 = arith.extui %161 : i1 to i32
    %c0_i32_77 = arith.constant 0 : i32
    %163 = arith.cmpi ne, %162, %c0_i32_77 : i32
    scf.if %163 {
      %164 = vector.shape_cast %159 : vector<16x32xf32> to vector<2x8x32xf32>
      %165 = vector.extract_strided_slice %164 {offsets = [0, 0, 0], sizes = [2, 1, 32], strides = [1, 1, 1]} : vector<2x8x32xf32> to vector<2x1x32xf32>
      %166 = vector.shape_cast %165 : vector<2x1x32xf32> to vector<2x32xf32>
      %167 = arith.truncf %166 : vector<2x32xf32> to vector<2x32xbf16>
      %c0_78 = arith.constant 0 : index
      %c0_79 = arith.constant 0 : index
      %168 = vector.load %arg18[%c0_78, %c0_79] : memref<32x128xbf16, #tpu.memory_space<vmem>>, vector<32x128xbf16>
      %cst_80 = arith.constant dense<0.000000e+00> : vector<2x128xf32>
      %169 = tpu.matmul %167, %168, %cst_80 {dimension_numbers = #tpu.dot_dimension_numbers<[1], [0], [0], [1], [0, 0, 1, 1], [], []>} : vector<2x32xbf16>, vector<32x128xbf16>, vector<2x128xf32> -> vector<2x128xf32>
      %c0_81 = arith.constant 0 : index
      %c0_82 = arith.constant 0 : index
      %170 = vector.load %arg19[%c0_81, %c0_82] : memref<1x128xf32, #tpu.memory_space<vmem>>, vector<1x128xf32>
      %171 = vector.broadcast %170 : vector<1x128xf32> to vector<2x128xf32>
      %172 = arith.addf %169, %171 : vector<2x128xf32>
      %c0_83 = arith.constant 0 : index
      %c0_84 = arith.constant 0 : index
      %173 = vector.load %arg20[%c0_83, %c0_84] : memref<2x128xf32, #tpu.memory_space<vmem>>, vector<2x128xf32>
      tpu.vector_store %arg20[%c0_83, %c0_84], %172 {strides = array<i32>} : memref<2x128xf32, #tpu.memory_space<vmem>>, vector<2x128xf32>,
    } else {
    }
    return
  }
  func.func @transform_0(%arg0: i32, %arg1: i32) -> (i32, i32, i32) {
    %c0_i32 = arith.constant 0 : i32
    %c0_i32_0 = arith.constant 0 : i32
    %c0_i32_1 = arith.constant 0 : i32
    return %arg0, %c0_i32, %c0_i32_0 : i32, i32, i32
  }
  func.func @transform_1(%arg0: i32, %arg1: i32) -> (i32, i32, i32) {
    %c0_i32 = arith.constant 0 : i32
    %c0_i32_0 = arith.constant 0 : i32
    %c0_i32_1 = arith.constant 0 : i32
    return %arg0, %c0_i32, %c0_i32_0 : i32, i32, i32
  }
  func.func @transform_2(%arg0: i32, %arg1: i32) -> (i32, i32) {
    %c0_i32 = arith.constant 0 : i32
    %c0_i32_0 = arith.constant 0 : i32
    %c0_i32_1 = arith.constant 0 : i32
    return %c0_i32, %c0_i32_0 : i32, i32
  }
  func.func @transform_3(%arg0: i32, %arg1: i32) -> (i32, i32) {
    %c0_i32 = arith.constant 0 : i32
    %c0_i32_0 = arith.constant 0 : i32
    %c0_i32_1 = arith.constant 0 : i32
    return %c0_i32, %c0_i32_0 : i32, i32
  }
  func.func @transform_4(%arg0: i32, %arg1: i32) -> (i32, i32, i32) {
    %c0_i32 = arith.constant 0 : i32
    %c0_i32_0 = arith.constant 0 : i32
    %c0_i32_1 = arith.constant 0 : i32
    return %arg1, %c0_i32, %c0_i32_0 : i32, i32, i32
  }
  func.func @transform_5(%arg0: i32, %arg1: i32) -> (i32, i32, i32) {
    %c0_i32 = arith.constant 0 : i32
    %c0_i32_0 = arith.constant 0 : i32
    %c0_i32_1 = arith.constant 0 : i32
    return %arg1, %c0_i32, %c0_i32_0 : i32, i32, i32
  }
  func.func @transform_6(%arg0: i32, %arg1: i32) -> (i32, i32, i32) {
    %c0_i32 = arith.constant 0 : i32
    %c0_i32_0 = arith.constant 0 : i32
    %c0_i32_1 = arith.constant 0 : i32
    return %arg1, %c0_i32, %c0_i32_0 : i32, i32, i32
  }
  func.func @transform_7(%arg0: i32, %arg1: i32) -> (i32, i32, i32) {
    %c0_i32 = arith.constant 0 : i32
    %c0_i32_0 = arith.constant 0 : i32
    %c0_i32_1 = arith.constant 0 : i32
    return %arg1, %c0_i32, %c0_i32_0 : i32, i32, i32
  }
  func.func @transform_8(%arg0: i32, %arg1: i32) -> (i32, i32, i32) {
    %c0_i32 = arith.constant 0 : i32
    %c0_i32_0 = arith.constant 0 : i32
    %c0_i32_1 = arith.constant 0 : i32
    return %arg1, %c0_i32, %c0_i32_0 : i32, i32, i32
  }
  func.func @transform_9(%arg0: i32, %arg1: i32) -> (i32, i32, i32) {
    %c0_i32 = arith.constant 0 : i32
    %c0_i32_0 = arith.constant 0 : i32
    %c0_i32_1 = arith.constant 0 : i32
    return %arg1, %c0_i32, %c0_i32_0 : i32, i32, i32
  }
  func.func @transform_10(%arg0: i32, %arg1: i32) -> (i32, i32, i32) {
    %c0_i32 = arith.constant 0 : i32
    %c0_i32_0 = arith.constant 0 : i32
    %c0_i32_1 = arith.constant 0 : i32
    return %arg1, %c0_i32, %c0_i32_0 : i32, i32, i32
  }
  func.func @transform_11(%arg0: i32, %arg1: i32) -> (i32, i32, i32) {
    %c0_i32 = arith.constant 0 : i32
    %c0_i32_0 = arith.constant 0 : i32
    %c0_i32_1 = arith.constant 0 : i32
    return %arg1, %c0_i32, %c0_i32_0 : i32, i32, i32
  }
  func.func @transform_12(%arg0: i32, %arg1: i32) -> (i32, i32, i32) {
    %c0_i32 = arith.constant 0 : i32
    %c0_i32_0 = arith.constant 0 : i32
    %c0_i32_1 = arith.constant 0 : i32
    return %arg1, %c0_i32, %c0_i32_0 : i32, i32, i32
  }
  func.func @transform_13(%arg0: i32, %arg1: i32) -> (i32, i32, i32) {
    %c0_i32 = arith.constant 0 : i32
    %c0_i32_0 = arith.constant 0 : i32
    %c0_i32_1 = arith.constant 0 : i32
    return %arg1, %c0_i32, %c0_i32_0 : i32, i32, i32
  }
  func.func @transform_14(%arg0: i32, %arg1: i32) -> (i32, i32, i32) {
    %c0_i32 = arith.constant 0 : i32
    %c0_i32_0 = arith.constant 0 : i32
    %c0_i32_1 = arith.constant 0 : i32
    return %arg1, %c0_i32, %c0_i32_0 : i32, i32, i32
  }
  func.func @transform_15(%arg0: i32, %arg1: i32) -> (i32, i32, i32) {
    %c0_i32 = arith.constant 0 : i32
    %c0_i32_0 = arith.constant 0 : i32
    %c0_i32_1 = arith.constant 0 : i32
    return %arg1, %c0_i32, %c0_i32_0 : i32, i32, i32
  }
  func.func @transform_16(%arg0: i32, %arg1: i32) -> (i32, i32) {
    %c0_i32 = arith.constant 0 : i32
    %c0_i32_0 = arith.constant 0 : i32
    %c0_i32_1 = arith.constant 0 : i32
    return %c0_i32, %c0_i32_0 : i32, i32
  }
  func.func @transform_17(%arg0: i32, %arg1: i32) -> (i32, i32) {
    %c0_i32 = arith.constant 0 : i32
    %c0_i32_0 = arith.constant 0 : i32
    %c0_i32_1 = arith.constant 0 : i32
    return %c0_i32, %c0_i32_0 : i32, i32
  }
  func.func @transform_18(%arg0: i32, %arg1: i32) -> (i32, i32) {
    %c0_i32 = arith.constant 0 : i32
    %c0_i32_0 = arith.constant 0 : i32
    return %arg0, %c0_i32 : i32, i32
  }
}

</mosaic_0001>

<llo_original>
// kernel: tpu_custom_call.1
$region0: #{tpu_custom_call.1}
  #allocation0 [shape = 'u32[]', space=smem, size = 0x4, offset = 0x4, fixed_abs, tag = 'smem constant byte address 0x4 - core index']
  #allocation1 [shape = 'u32[144,128]{1,0:T(1,128)}', space=vmem, size = 0x12000, scoped, tag = 'internal scratch']
  #allocation2 [shape = 'f32[16,32]{1,0:T(8,128)}', space=vmem, size = 0x2000, scoped, tag = 'scratch operand']
  #allocation3 [shape = 'f32[16,32]{1,0:T(8,128)}', space=vmem, size = 0x2000, scoped, tag = 'scratch operand']
  %s0 = inlined_call_operand.hbm [shape: f32[2,8,32], index: 0, kind: input, shape index: {}]
  %s1 = inlined_call_operand.hbm [shape: f32[2,1,8], index: 1, kind: input, shape index: {}]
  %s2 = inlined_call_operand.vmem [shape: f32[1,32], index: 2, kind: input, shape index: {}]
  %s3 = inlined_call_operand.hbm [shape: f32[1,32], index: 3, kind: input, shape index: {}]
  %s4 = inlined_call_operand.vmem [shape: bf16[2,32,96], index: 4, kind: input, shape index: {}]
  %s5 = inlined_call_operand.hbm [shape: f32[2,1,96], index: 5, kind: input, shape index: {}]
  %s6 = inlined_call_operand.vmem [shape: bf16[2,32,32], index: 6, kind: input, shape index: {}]
  %s7 = inlined_call_operand.hbm [shape: f32[2,1,32], index: 7, kind: input, shape index: {}]
  %s8 = inlined_call_operand.hbm [shape: f32[2,1,32], index: 8, kind: input, shape index: {}]
  %s9 = inlined_call_operand.hbm [shape: f32[2,1,32], index: 9, kind: input, shape index: {}]
  %s10 = inlined_call_operand.vmem [shape: bf16[2,32,64], index: 10, kind: input, shape index: {}]
  %s11 = inlined_call_operand.hbm [shape: f32[2,1,64], index: 11, kind: input, shape index: {}]
  %s12 = inlined_call_operand.vmem [shape: bf16[2,64,32], index: 12, kind: input, shape index: {}]
  %s13 = inlined_call_operand.hbm [shape: f32[2,1,32], index: 13, kind: input, shape index: {}]
  %s14 = inlined_call_operand.vmem [shape: f32[2,1,32], index: 14, kind: input, shape index: {}]
  %s15 = inlined_call_operand.vmem [shape: f32[2,1,32], index: 15, kind: input, shape index: {}]
  %s16 = inlined_call_operand.vmem [shape: bf16[32,128], index: 16, kind: input, shape index: {}]
  %s17 = inlined_call_operand.vmem [shape: f32[1,128], index: 17, kind: input, shape index: {}]
  %s18 = inlined_call_operand.hbm [shape: f32[2,128], index: 18, kind: output, shape index: {}]
  %s19 = sld [smem:[#allocation0]]
  $region149: #{tpu_custom_call.1} parent=0
    _
  %s21 = ssub.s32 1, %s19
  %s22 = scalar_select 0, %s21, %s19
  $region1: #{tpu_custom_call.1} parent=0
    #allocation4 [shape = 'u8[8192]{0}', space=vmem, size = 0x2000, scoped, tag = 'input window, operand 0, single buffered']
    #allocation5 [shape = 's32[2]{0}', space=sflag, size = 0x8, scoped, tag = 'scoped memory for tpu_custom_call.1']
    #allocation6 [shape = 's32[2]{0}', space=sflag, size = 0x8, scoped, tag = 'scoped memory for tpu_custom_call.1']
    #allocation7 [shape = 'u8[1024]{0}', space=vmem, size = 0x400, scoped, tag = 'input window, operand 1, single buffered']
    #allocation8 [shape = 's32[1]{0}', space=sflag, size = 0x4, scoped, tag = 'scoped memory for tpu_custom_call.1']
    #allocation9 [shape = 'u8[512]{0}', space=vmem, size = 0x400, scoped, tag = 'input window, operand 3, single buffered']
    #allocation10 [shape = 'u8[1024]{0}', space=vmem, size = 0x400, scoped, tag = 'input window, operand 5']
    #allocation11 [shape = 's32[2]{0}', space=sflag, size = 0x8, scoped, tag = 'scoped memory for tpu_custom_call.1']
    #allocation12 [shape = 'u8[1024]{0}', space=vmem, size = 0x400, scoped, tag = 'input window, operand 7']
    #allocation13 [shape = 'u8[1024]{0}', space=vmem, size = 0x400, scoped, tag = 'input window, operand 8']
    #allocation14 [shape = 's32[2]{0}', space=sflag, size = 0x8, scoped, tag = 'scoped memory for tpu_custom_call.1']
    #allocation15 [shape = 'u8[1024]{0}', space=vmem, size = 0x400, scoped, tag = 'input window, operand 9']
    #allocation16 [shape = 'u8[1024]{0}', space=vmem, size = 0x400, scoped, tag = 'input window, operand 11']
    #allocation17 [shape = 's32[2]{0}', space=sflag, size = 0x8, scoped, tag = 'scoped memory for tpu_custom_call.1']
    #allocation18 [shape = 'u8[1024]{0}', space=vmem, size = 0x400, scoped, tag = 'input window, operand 13']
    #allocation19 [shape = 'u8[1024]{0}', space=vmem, size = 0x400, scoped, tag = 'output window, operand 0, single buffered']
    %23 = vsyncpa [#allocation5], 0
    %24 = vsyncpa [#allocation8], 0
    %25 = vsyncpa [#allocation11], 0
    %s26 = scalar_lea.sflag [#allocation11], 1
    %27 = vsyncpa %s26, 0
    %28 = vsyncpa [#allocation14], 0
    %s29 = scalar_lea.sflag [#allocation14], 1
    %30 = vsyncpa %s29, 0
    %31 = vsyncpa [#allocation17], 0
    %s32 = scalar_lea.sflag [#allocation17], 1
    %33 = vsyncpa %s32, 0
    %34 = vsyncpa [#allocation6], 0
    loop: start=0, step=1, limit=4
    $region2: #{tpu_custom_call.1} parent=1 // loop_pre_header
      _
    $region3: #{tpu_custom_call.1} parent=1 // loop_header
      %s36 = sphi 0, %s40
      %p37 = scmp.ge.s32.totalorder %s36, 4
      %s43 = sphi 0, %s55
      %s44 = sphi 0, %s51
      %s45 = sphi 0, %s43
      %s46 = sphi 0, %s44
      %s47 = sphi 0, %s45
      %s48 = sphi 0, %s46
      %s58 = sphi 0, %s60
      %s61 = sphi 0, %s58
      %s62 = sphi 0, %s61
      %s78 = sphi 0, %s62
      %s84 = sphi 0, %s86
      %s87 = sphi 0, %s84
      %s88 = sphi 0, %s87
      %s104 = sphi 0, %s88
      %s108 = sphi 0, %s108
      %s110 = sphi 0, %s108
      %s111 = sphi 0, %s110
      %s125 = sphi 0, %s111
      %s129 = sphi 0, %s129
      %s131 = sphi 0, %s129
      %s132 = sphi 0, %s131
      %s146 = sphi 0, %s132
      %s152 = sphi 0, %s154
      %s155 = sphi 0, %s152
      %s156 = sphi 0, %s155
      %s172 = sphi 0, %s156
      %s178 = sphi 0, %s180
      %s181 = sphi 0, %s178
      %s182 = sphi 0, %s181
      %s198 = sphi 0, %s182
      %s204 = sphi 0, %s206
      %s207 = sphi 0, %s204
      %s208 = sphi 0, %s207
      %s224 = sphi 0, %s208
      %s230 = sphi 0, %s232
      %s233 = sphi 0, %s230
      %s234 = sphi 0, %s233
      %s250 = sphi 0, %s234
      %s256 = sphi 0, %s258
      %s259 = sphi 0, %s256
      %s260 = sphi 0, %s259
      %s276 = sphi 0, %s260
      %s282 = sphi 0, %s284
      %s285 = sphi 0, %s282
      %s286 = sphi 0, %s285
      %s302 = sphi 0, %s286
      %s308 = sphi 0, %s310
      %s311 = sphi 0, %s308
      %s312 = sphi 0, %s311
      %s328 = sphi 0, %s312
      %s334 = sphi 0, %s336
      %s337 = sphi 0, %s334
      %s338 = sphi 0, %s337
      %s354 = sphi 0, %s338
      %s360 = sphi 0, %s362
      %s363 = sphi 0, %s360
      %s364 = sphi 0, %s363
      %s380 = sphi 0, %s364
      %s386 = sphi 0, %s388
      %s389 = sphi 0, %s386
      %s390 = sphi 0, %s389
      %s406 = sphi 0, %s390
      %s412 = sphi 0, %s414
      %s415 = sphi 0, %s412
      %s416 = sphi 0, %s415
      %s432 = sphi 0, %s416
      %s438 = sphi 0, %s440
      %s441 = sphi 0, %s438
      %s442 = sphi 0, %s441
      %s458 = sphi 0, %s442
      %s462 = sphi 0, %s462
      %s464 = sphi 0, %s462
      %s465 = sphi 0, %s464
      %s479 = sphi 0, %s465
      %s483 = sphi 0, %s483
      %s485 = sphi 0, %s483
      %s486 = sphi 0, %s485
      %s500 = sphi 0, %s486
      %s506 = sphi 0, %s508
      %s509 = sphi 0, %s506
      %s510 = sphi 0, %s509
      %s526 = sphi 0, %s510
    $region4: #{tpu_custom_call.1} parent=1 // loop_header_branch
      %39 = sbr.rel (%p37) target = $region8
    $region5: #{tpu_custom_call.1} parent=1 // loop_body
      %s41 = ssub.s32 %s36, 1
      %s42 = ssub.s32 %s36, 2
      %s49 = sadd.s32 1, %s44
      %p50 = scmp.ge.s32.totalorder %s49, 2
      %s51 = scalar_select %p50, 0, %s49
      %s52 = sadd.s32 1, %s43
      %s53 = scalar_select %p50, %s52, %s43
      %p54 = scmp.ge.s32.totalorder %s53, 1
      %s55 = scalar_select %p54, 0, %s53
      %s56 = ssub.s32 %s43, %s55
      %p57 = scmp.eq.s32.totalorder %s56, 0
      %s59 = sadd.s32 %s58, 1
      %s60 = scalar_select %p57, %s58, %s59
      %p63 = pneg %p57
      %p64 = scmp.eq.s32.totalorder %s36, 1
      %p65 = por %p63, %p64
      %p66 = scmp.ne.s32.totalorder %s58, %s61
      %p67 = scmp.eq.s32.totalorder %s36, 0
      %p68 = por %p66, %p67
      %p69 = scmp.ne.s32.totalorder %s58, %s61
      %p70 = scmp.eq.s32.totalorder %s41, 1
      %p71 = por %p69, %p70
      %p72 = scmp.ne.s32.totalorder %s61, %s62
      %p73 = scmp.eq.s32.totalorder %s41, 0
      %p74 = por %p72, %p73
      %p75 = scmp.ne.s32.totalorder %s61, %s62
      %p76 = scmp.eq.s32.totalorder %s42, 1
      %p77 = por %p75, %p76
      %p79 = scmp.ne.s32.totalorder %s62, %s78
      %p80 = scmp.eq.s32.totalorder %s42, 0
      %p81 = por %p79, %p80
      %s82 = ssub.s32 %s43, %s55
      %p83 = scmp.eq.s32.totalorder %s82, 0
      %s85 = sadd.s32 %s84, 1
      %s86 = scalar_select %p83, %s84, %s85
      %p89 = pneg %p83
      %p90 = scmp.eq.s32.totalorder %s36, 1
      %p91 = por %p89, %p90
      %p92 = scmp.ne.s32.totalorder %s84, %s87
      %p93 = scmp.eq.s32.totalorder %s36, 0
      %p94 = por %p92, %p93
      %p95 = scmp.ne.s32.totalorder %s84, %s87
      %p96 = scmp.eq.s32.totalorder %s41, 1
      %p97 = por %p95, %p96
      %p98 = scmp.ne.s32.totalorder %s87, %s88
      %p99 = scmp.eq.s32.totalorder %s41, 0
      %p100 = por %p98, %p99
      %p101 = scmp.ne.s32.totalorder %s87, %s88
      %p102 = scmp.eq.s32.totalorder %s42, 1
      %p103 = por %p101, %p102
      %p105 = scmp.ne.s32.totalorder %s88, %s104
      %p106 = scmp.eq.s32.totalorder %s42, 0
      %p107 = por %p105, %p106
      %s109 = sadd.s32 %s108, 1
      %p112 = scmp.eq.s32.totalorder %s36, 1
      %p113 = scmp.ne.s32.totalorder %s108, %s110
      %p114 = scmp.eq.s32.totalorder %s36, 0
      %p115 = por %p113, %p114
      %p116 = scmp.ne.s32.totalorder %s108, %s110
      %p117 = scmp.eq.s32.totalorder %s41, 1
      %p118 = por %p116, %p117
      %p119 = scmp.ne.s32.totalorder %s110, %s111
      %p120 = scmp.eq.s32.totalorder %s41, 0
      %p121 = por %p119, %p120
      %p122 = scmp.ne.s32.totalorder %s110, %s111
      %p123 = scmp.eq.s32.totalorder %s42, 1
      %p124 = por %p122, %p123
      %p126 = scmp.ne.s32.totalorder %s111, %s125
      %p127 = scmp.eq.s32.totalorder %s42, 0
      %p128 = por %p126, %p127
      %s130 = sadd.s32 %s129, 1
      %p133 = scmp.eq.s32.totalorder %s36, 1
      %p134 = scmp.ne.s32.totalorder %s129, %s131
      %p135 = scmp.eq.s32.totalorder %s36, 0
      %p136 = por %p134, %p135
      %p137 = scmp.ne.s32.totalorder %s129, %s131
      %p138 = scmp.eq.s32.totalorder %s41, 1
      %p139 = por %p137, %p138
      %p140 = scmp.ne.s32.totalorder %s131, %s132
      %p141 = scmp.eq.s32.totalorder %s41, 0
      %p142 = por %p140, %p141
      %p143 = scmp.ne.s32.totalorder %s131, %s132
      %p144 = scmp.eq.s32.totalorder %s42, 1
      %p145 = por %p143, %p144
      %p147 = scmp.ne.s32.totalorder %s132, %s146
      %p148 = scmp.eq.s32.totalorder %s42, 0
      %p149 = por %p147, %p148
      %s150 = ssub.s32 %s44, %s51
      %p151 = scmp.eq.s32.totalorder %s150, 0
      %s153 = sadd.s32 %s152, 1
      %s154 = scalar_select %p151, %s152, %s153
      %p157 = pneg %p151
      %p158 = scmp.eq.s32.totalorder %s36, 1
      %p159 = por %p157, %p158
      %p160 = scmp.ne.s32.totalorder %s152, %s155
      %p161 = scmp.eq.s32.totalorder %s36, 0
      %p162 = por %p160, %p161
      %p163 = scmp.ne.s32.totalorder %s152, %s155
      %p164 = scmp.eq.s32.totalorder %s41, 1
      %p165 = por %p163, %p164
      %p166 = scmp.ne.s32.totalorder %s155, %s156
      %p167 = scmp.eq.s32.totalorder %s41, 0
      %p168 = por %p166, %p167
      %p169 = scmp.ne.s32.totalorder %s155, %s156
      %p170 = scmp.eq.s32.totalorder %s42, 1
      %p171 = por %p169, %p170
      %p173 = scmp.ne.s32.totalorder %s156, %s172
      %p174 = scmp.eq.s32.totalorder %s42, 0
      %p175 = por %p173, %p174
      %s176 = ssub.s32 %s44, %s51
      %p177 = scmp.eq.s32.totalorder %s176, 0
      %s179 = sadd.s32 %s178, 1
      %s180 = scalar_select %p177, %s178, %s179
      %p183 = pneg %p177
      %p184 = scmp.eq.s32.totalorder %s36, 1
      %p185 = por %p183, %p184
      %p186 = scmp.ne.s32.totalorder %s178, %s181
      %p187 = scmp.eq.s32.totalorder %s36, 0
      %p188 = por %p186, %p187
      %p189 = scmp.ne.s32.totalorder %s178, %s181
      %p190 = scmp.eq.s32.totalorder %s41, 1
      %p191 = por %p189, %p190
      %p192 = scmp.ne.s32.totalorder %s181, %s182
      %p193 = scmp.eq.s32.totalorder %s41, 0
      %p194 = por %p192, %p193
      %p195 = scmp.ne.s32.totalorder %s181, %s182
      %p196 = scmp.eq.s32.totalorder %s42, 1
      %p197 = por %p195, %p196
      %p199 = scmp.ne.s32.totalorder %s182, %s198
      %p200 = scmp.eq.s32.totalorder %s42, 0
      %p201 = por %p199, %p200
      %s202 = ssub.s32 %s44, %s51
      %p203 = scmp.eq.s32.totalorder %s202, 0
      %s205 = sadd.s32 %s204, 1
      %s206 = scalar_select %p203, %s204, %s205
      %p209 = pneg %p203
      %p210 = scmp.eq.s32.totalorder %s36, 1
      %p211 = por %p209, %p210
      %p212 = scmp.ne.s32.totalorder %s204, %s207
      %p213 = scmp.eq.s32.totalorder %s36, 0
      %p214 = por %p212, %p213
      %p215 = scmp.ne.s32.totalorder %s204, %s207
      %p216 = scmp.eq.s32.totalorder %s41, 1
      %p217 = por %p215, %p216
      %p218 = scmp.ne.s32.totalorder %s207, %s208
      %p219 = scmp.eq.s32.totalorder %s41, 0
      %p220 = por %p218, %p219
      %p221 = scmp.ne.s32.totalorder %s207, %s208
      %p222 = scmp.eq.s32.totalorder %s42, 1
      %p223 = por %p221, %p222
      %p225 = scmp.ne.s32.totalorder %s208, %s224
      %p226 = scmp.eq.s32.totalorder %s42, 0
      %p227 = por %p225, %p226
      %s228 = ssub.s32 %s44, %s51
      %p229 = scmp.eq.s32.totalorder %s228, 0
      %s231 = sadd.s32 %s230, 1
      %s232 = scalar_select %p229, %s230, %s231
      %p235 = pneg %p229
      %p236 = scmp.eq.s32.totalorder %s36, 1
      %p237 = por %p235, %p236
      %p238 = scmp.ne.s32.totalorder %s230, %s233
      %p239 = scmp.eq.s32.totalorder %s36, 0
      %p240 = por %p238, %p239
      %p241 = scmp.ne.s32.totalorder %s230, %s233
      %p242 = scmp.eq.s32.totalorder %s41, 1
      %p243 = por %p241, %p242
      %p244 = scmp.ne.s32.totalorder %s233, %s234
      %p245 = scmp.eq.s32.totalorder %s41, 0
      %p246 = por %p244, %p245
      %p247 = scmp.ne.s32.totalorder %s233, %s234
      %p248 = scmp.eq.s32.totalorder %s42, 1
      %p249 = por %p247, %p248
      %p251 = scmp.ne.s32.totalorder %s234, %s250
      %p252 = scmp.eq.s32.totalorder %s42, 0
      %p253 = por %p251, %p252
      %s254 = ssub.s32 %s44, %s51
      %p255 = scmp.eq.s32.totalorder %s254, 0
      %s257 = sadd.s32 %s256, 1
      %s258 = scalar_select %p255, %s256, %s257
      %p261 = pneg %p255
      %p262 = scmp.eq.s32.totalorder %s36, 1
      %p263 = por %p261, %p262
      %p264 = scmp.ne.s32.totalorder %s256, %s259
      %p265 = scmp.eq.s32.totalorder %s36, 0
      %p266 = por %p264, %p265
      %p267 = scmp.ne.s32.totalorder %s256, %s259
      %p268 = scmp.eq.s32.totalorder %s41, 1
      %p269 = por %p267, %p268
      %p270 = scmp.ne.s32.totalorder %s259, %s260
      %p271 = scmp.eq.s32.totalorder %s41, 0
      %p272 = por %p270, %p271
      %p273 = scmp.ne.s32.totalorder %s259, %s260
      %p274 = scmp.eq.s32.totalorder %s42, 1
      %p275 = por %p273, %p274
      %p277 = scmp.ne.s32.totalorder %s260, %s276
      %p278 = scmp.eq.s32.totalorder %s42, 0
      %p279 = por %p277, %p278
      %s280 = ssub.s32 %s44, %s51
      %p281 = scmp.eq.s32.totalorder %s280, 0
      %s283 = sadd.s32 %s282, 1
      %s284 = scalar_select %p281, %s282, %s283
      %p287 = pneg %p281
      %p288 = scmp.eq.s32.totalorder %s36, 1
      %p289 = por %p287, %p288
      %p290 = scmp.ne.s32.totalorder %s282, %s285
      %p291 = scmp.eq.s32.totalorder %s36, 0
      %p292 = por %p290, %p291
      %p293 = scmp.ne.s32.totalorder %s282, %s285
      %p294 = scmp.eq.s32.totalorder %s41, 1
      %p295 = por %p293, %p294
      %p296 = scmp.ne.s32.totalorder %s285, %s286
      %p297 = scmp.eq.s32.totalorder %s41, 0
      %p298 = por %p296, %p297
      %p299 = scmp.ne.s32.totalorder %s285, %s286
      %p300 = scmp.eq.s32.totalorder %s42, 1
      %p301 = por %p299, %p300
      %p303 = scmp.ne.s32.totalorder %s286, %s302
      %p304 = scmp.eq.s32.totalorder %s42, 0
      %p305 = por %p303, %p304
      %s306 = ssub.s32 %s44, %s51
      %p307 = scmp.eq.s32.totalorder %s306, 0
      %s309 = sadd.s32 %s308, 1
      %s310 = scalar_select %p307, %s308, %s309
      %p313 = pneg %p307
      %p314 = scmp.eq.s32.totalorder %s36, 1
      %p315 = por %p313, %p314
      %p316 = scmp.ne.s32.totalorder %s308, %s311
      %p317 = scmp.eq.s32.totalorder %s36, 0
      %p318 = por %p316, %p317
      %p319 = scmp.ne.s32.totalorder %s308, %s311
      %p320 = scmp.eq.s32.totalorder %s41, 1
      %p321 = por %p319, %p320
      %p322 = scmp.ne.s32.totalorder %s311, %s312
      %p323 = scmp.eq.s32.totalorder %s41, 0
      %p324 = por %p322, %p323
      %p325 = scmp.ne.s32.totalorder %s311, %s312
      %p326 = scmp.eq.s32.totalorder %s42, 1
      %p327 = por %p325, %p326
      %p329 = scmp.ne.s32.totalorder %s312, %s328
      %p330 = scmp.eq.s32.totalorder %s42, 0
      %p331 = por %p329, %p330
      %s332 = ssub.s32 %s44, %s51
      %p333 = scmp.eq.s32.totalorder %s332, 0
      %s335 = sadd.s32 %s334, 1
      %s336 = scalar_select %p333, %s334, %s335
      %p339 = pneg %p333
      %p340 = scmp.eq.s32.totalorder %s36, 1
      %p341 = por %p339, %p340
      %p342 = scmp.ne.s32.totalorder %s334, %s337
      %p343 = scmp.eq.s32.totalorder %s36, 0
      %p344 = por %p342, %p343
      %p345 = scmp.ne.s32.totalorder %s334, %s337
      %p346 = scmp.eq.s32.totalorder %s41, 1
      %p347 = por %p345, %p346
      %p348 = scmp.ne.s32.totalorder %s337, %s338
      %p349 = scmp.eq.s32.totalorder %s41, 0
      %p350 = por %p348, %p349
      %p351 = scmp.ne.s32.totalorder %s337, %s338
      %p352 = scmp.eq.s32.totalorder %s42, 1
      %p353 = por %p351, %p352
      %p355 = scmp.ne.s32.totalorder %s338, %s354
      %p356 = scmp.eq.s32.totalorder %s42, 0
      %p357 = por %p355, %p356
      %s358 = ssub.s32 %s44, %s51
      %p359 = scmp.eq.s32.totalorder %s358, 0
      %s361 = sadd.s32 %s360, 1
      %s362 = scalar_select %p359, %s360, %s361
      %p365 = pneg %p359
      %p366 = scmp.eq.s32.totalorder %s36, 1
      %p367 = por %p365, %p366
      %p368 = scmp.ne.s32.totalorder %s360, %s363
      %p369 = scmp.eq.s32.totalorder %s36, 0
      %p370 = por %p368, %p369
      %p371 = scmp.ne.s32.totalorder %s360, %s363
      %p372 = scmp.eq.s32.totalorder %s41, 1
      %p373 = por %p371, %p372
      %p374 = scmp.ne.s32.totalorder %s363, %s364
      %p375 = scmp.eq.s32.totalorder %s41, 0
      %p376 = por %p374, %p375
      %p377 = scmp.ne.s32.totalorder %s363, %s364
      %p378 = scmp.eq.s32.totalorder %s42, 1
      %p379 = por %p377, %p378
      %p381 = scmp.ne.s32.totalorder %s364, %s380
      %p382 = scmp.eq.s32.totalorder %s42, 0
      %p383 = por %p381, %p382
      %s384 = ssub.s32 %s44, %s51
      %p385 = scmp.eq.s32.totalorder %s384, 0
      %s387 = sadd.s32 %s386, 1
      %s388 = scalar_select %p385, %s386, %s387
      %p391 = pneg %p385
      %p392 = scmp.eq.s32.totalorder %s36, 1
      %p393 = por %p391, %p392
      %p394 = scmp.ne.s32.totalorder %s386, %s389
      %p395 = scmp.eq.s32.totalorder %s36, 0
      %p396 = por %p394, %p395
      %p397 = scmp.ne.s32.totalorder %s386, %s389
      %p398 = scmp.eq.s32.totalorder %s41, 1
      %p399 = por %p397, %p398
      %p400 = scmp.ne.s32.totalorder %s389, %s390
      %p401 = scmp.eq.s32.totalorder %s41, 0
      %p402 = por %p400, %p401
      %p403 = scmp.ne.s32.totalorder %s389, %s390
      %p404 = scmp.eq.s32.totalorder %s42, 1
      %p405 = por %p403, %p404
      %p407 = scmp.ne.s32.totalorder %s390, %s406
      %p408 = scmp.eq.s32.totalorder %s42, 0
      %p409 = por %p407, %p408
      %s410 = ssub.s32 %s44, %s51
      %p411 = scmp.eq.s32.totalorder %s410, 0
      %s413 = sadd.s32 %s412, 1
      %s414 = scalar_select %p411, %s412, %s413
      %p417 = pneg %p411
      %p418 = scmp.eq.s32.totalorder %s36, 1
      %p419 = por %p417, %p418
      %p420 = scmp.ne.s32.totalorder %s412, %s415
      %p421 = scmp.eq.s32.totalorder %s36, 0
      %p422 = por %p420, %p421
      %p423 = scmp.ne.s32.totalorder %s412, %s415
      %p424 = scmp.eq.s32.totalorder %s41, 1
      %p425 = por %p423, %p424
      %p426 = scmp.ne.s32.totalorder %s415, %s416
      %p427 = scmp.eq.s32.totalorder %s41, 0
      %p428 = por %p426, %p427
      %p429 = scmp.ne.s32.totalorder %s415, %s416
      %p430 = scmp.eq.s32.totalorder %s42, 1
      %p431 = por %p429, %p430
      %p433 = scmp.ne.s32.totalorder %s416, %s432
      %p434 = scmp.eq.s32.totalorder %s42, 0
      %p435 = por %p433, %p434
      %s436 = ssub.s32 %s44, %s51
      %p437 = scmp.eq.s32.totalorder %s436, 0
      %s439 = sadd.s32 %s438, 1
      %s440 = scalar_select %p437, %s438, %s439
      %p443 = pneg %p437
      %p444 = scmp.eq.s32.totalorder %s36, 1
      %p445 = por %p443, %p444
      %p446 = scmp.ne.s32.totalorder %s438, %s441
      %p447 = scmp.eq.s32.totalorder %s36, 0
      %p448 = por %p446, %p447
      %p449 = scmp.ne.s32.totalorder %s438, %s441
      %p450 = scmp.eq.s32.totalorder %s41, 1
      %p451 = por %p449, %p450
      %p452 = scmp.ne.s32.totalorder %s441, %s442
      %p453 = scmp.eq.s32.totalorder %s41, 0
      %p454 = por %p452, %p453
      %p455 = scmp.ne.s32.totalorder %s441, %s442
      %p456 = scmp.eq.s32.totalorder %s42, 1
      %p457 = por %p455, %p456
      %p459 = scmp.ne.s32.totalorder %s442, %s458
      %p460 = scmp.eq.s32.totalorder %s42, 0
      %p461 = por %p459, %p460
      %s463 = sadd.s32 %s462, 1
      %p466 = scmp.eq.s32.totalorder %s36, 1
      %p467 = scmp.ne.s32.totalorder %s462, %s464
      %p468 = scmp.eq.s32.totalorder %s36, 0
      %p469 = por %p467, %p468
      %p470 = scmp.ne.s32.totalorder %s462, %s464
      %p471 = scmp.eq.s32.totalorder %s41, 1
      %p472 = por %p470, %p471
      %p473 = scmp.ne.s32.totalorder %s464, %s465
      %p474 = scmp.eq.s32.totalorder %s41, 0
      %p475 = por %p473, %p474
      %p476 = scmp.ne.s32.totalorder %s464, %s465
      %p477 = scmp.eq.s32.totalorder %s42, 1
      %p478 = por %p476, %p477
      %p480 = scmp.ne.s32.totalorder %s465, %s479
      %p481 = scmp.eq.s32.totalorder %s42, 0
      %p482 = por %p480, %p481
      %s484 = sadd.s32 %s483, 1
      %p487 = scmp.eq.s32.totalorder %s36, 1
      %p488 = scmp.ne.s32.totalorder %s483, %s485
      %p489 = scmp.eq.s32.totalorder %s36, 0
      %p490 = por %p488, %p489
      %p491 = scmp.ne.s32.totalorder %s483, %s485
      %p492 = scmp.eq.s32.totalorder %s41, 1
      %p493 = por %p491, %p492
      %p494 = scmp.ne.s32.totalorder %s485, %s486
      %p495 = scmp.eq.s32.totalorder %s41, 0
      %p496 = por %p494, %p495
      %p497 = scmp.ne.s32.totalorder %s485, %s486
      %p498 = scmp.eq.s32.totalorder %s42, 1
      %p499 = por %p497, %p498
      %p501 = scmp.ne.s32.totalorder %s486, %s500
      %p502 = scmp.eq.s32.totalorder %s42, 0
      %p503 = por %p501, %p502
      %s504 = ssub.s32 %s43, %s55
      %p505 = scmp.eq.s32.totalorder %s504, 0
      %s507 = sadd.s32 %s506, 1
      %s508 = scalar_select %p505, %s506, %s507
      %p511 = pneg %p505
      %p512 = scmp.eq.s32.totalorder %s36, 1
      %p513 = por %p511, %p512
      %p514 = scmp.ne.s32.totalorder %s506, %s509
      %p515 = scmp.eq.s32.totalorder %s36, 0
      %p516 = por %p514, %p515
      %p517 = scmp.ne.s32.totalorder %s506, %s509
      %p518 = scmp.eq.s32.totalorder %s41, 1
      %p519 = por %p517, %p518
      %p520 = scmp.ne.s32.totalorder %s509, %s510
      %p521 = scmp.eq.s32.totalorder %s41, 0
      %p522 = por %p520, %p521
      %p523 = scmp.ne.s32.totalorder %s509, %s510
      %p524 = scmp.eq.s32.totalorder %s42, 1
      %p525 = por %p523, %p524
      %p527 = scmp.ne.s32.totalorder %s510, %s526
      %p528 = scmp.eq.s32.totalorder %s42, 0
      %p529 = por %p527, %p528
      %p530 = scmp.le.s32.totalorder 1, %s36
      %p531 = scmp.lt.s32.totalorder %s36, 3
      %p532 = pnand %p530, %p531
      %p533 = pneg %p532
      // Predicated region
      $region9: #{tpu_custom_call.1} parent=5 // pred_check
        _
      $region10: #{tpu_custom_call.1} parent=5 // pred_check_branch
        %535 = sbr.rel (%p532) target = $region12
      $region11: #{tpu_custom_call.1} parent=5 // pred_region
        %s536 = ssub.s32 %s36, 1
        // Predicated region
        $region13: #{tpu_custom_call.1} parent=11 // pred_check
          %p537 = pneg %p74
        $region14: #{tpu_custom_call.1} parent=11 // pred_check_branch
          %539 = sbr.rel (%p537) target = $region16
        $region15: #{tpu_custom_call.1} parent=11 // pred_region
          %s540 = smul.u32 2, %s45
          %s542 = ssub.s32 256, 256
          %543 = vsyncadd [#allocation5], %s542
          %s544 = smul.addr %s540, 128
          %s545 = scalar_lea.hbm %s0, %s544
          %s546 = sshll.u32 [#allocation4], 4
          %s547 = int_to_ptr.vmem [resolvable:$true] %s546
          %552 = dma.hbm_to_vmem [thread:$0]  %s545, 256, %s547, [#allocation5], 128, 128, 8
        $region16: #{tpu_custom_call.1} parent=11 // pred_fallthru
          _
        // Predicated region
        $region17: #{tpu_custom_call.1} parent=11 // pred_check
          %p553 = pneg %p100
        $region18: #{tpu_custom_call.1} parent=11 // pred_check_branch
          %555 = sbr.rel (%p553) target = $region20
        $region19: #{tpu_custom_call.1} parent=11 // pred_region
          %s556 = smul.u32 2, %s45
          %s558 = ssub.s32 32, 32
          %559 = vsyncadd [#allocation8], %s558
          %s560 = smul.addr %s556, 16
          %s561 = scalar_lea.hbm %s1, %s560
          %s562 = sshll.u32 [#allocation7], 4
          %s563 = int_to_ptr.vmem [resolvable:$true] %s562
          %568 = dma.hbm_to_vmem [thread:$0]  %s561, 32, %s563, [#allocation8], 16, 16, 1
        $region20: #{tpu_custom_call.1} parent=11 // pred_fallthru
          _
        // Predicated region
        $region21: #{tpu_custom_call.1} parent=11 // pred_check
          %p569 = pneg %p121
        $region22: #{tpu_custom_call.1} parent=11 // pred_check_branch
          %571 = sbr.rel (%p569) target = $region24
        $region23: #{tpu_custom_call.1} parent=11 // pred_region
          _
        $region24: #{tpu_custom_call.1} parent=11 // pred_fallthru
          _
        // Predicated region
        $region25: #{tpu_custom_call.1} parent=11 // pred_check
          %p572 = pneg %p142
        $region26: #{tpu_custom_call.1} parent=11 // pred_check_branch
          %574 = sbr.rel (%p572) target = $region28
        $region27: #{tpu_custom_call.1} parent=11 // pred_region
          %s576 = ssub.s32 16, 16
          %577 = vsyncadd [#allocation8], %s576
          %s579 = sshll.u32 [#allocation9], 4
          %s580 = int_to_ptr.vmem [resolvable:$true] %s579
          %582 = dma.hbm_to_vmem [thread:$0]  %s3, 16, %s580, [#allocation8]
        $region28: #{tpu_custom_call.1} parent=11 // pred_fallthru
          _
        // Predicated region
        $region29: #{tpu_custom_call.1} parent=11 // pred_check
          %p583 = pneg %p475
        $region30: #{tpu_custom_call.1} parent=11 // pred_check_branch
          %585 = sbr.rel (%p583) target = $region32
        $region31: #{tpu_custom_call.1} parent=11 // pred_region
          _
        $region32: #{tpu_custom_call.1} parent=11 // pred_fallthru
          _
        // Predicated region
        $region33: #{tpu_custom_call.1} parent=11 // pred_check
          %p586 = pneg %p496
        $region34: #{tpu_custom_call.1} parent=11 // pred_check_branch
          %588 = sbr.rel (%p586) target = $region36
        $region35: #{tpu_custom_call.1} parent=11 // pred_region
          _
        $region36: #{tpu_custom_call.1} parent=11 // pred_fallthru
          _
      $region12: #{tpu_custom_call.1} parent=5 // pred_fallthru
        _
      %p589 = scmp.lt.s32.totalorder %s36, 2
      // Predicated region
      $region37: #{tpu_custom_call.1} parent=5 // pred_check
        %p590 = pneg %p589
      $region38: #{tpu_custom_call.1} parent=5 // pred_check_branch
        %592 = sbr.rel (%p590) target = $region40
      $region39: #{tpu_custom_call.1} parent=5 // pred_region
        // Predicated region
        $region41: #{tpu_custom_call.1} parent=39 // pred_check
          %p593 = pneg %p162
        $region42: #{tpu_custom_call.1} parent=39 // pred_check_branch
          %595 = sbr.rel (%p593) target = $region44
        $region43: #{tpu_custom_call.1} parent=39 // pred_region
          %p596 = scmp.lt.s32.totalorder %s44, 1
          %s597 = scalar_select %p596, %s44, 1
          %s598 = smul.addr %s597, 4
          %s599 = smul.addr %s598, 4
          %s600 = scalar_lea.vmem %s4, %s599
        $region44: #{tpu_custom_call.1} parent=39 // pred_fallthru
          _
        // Predicated region
        $region45: #{tpu_custom_call.1} parent=39 // pred_check
          %p601 = pneg %p188
        $region46: #{tpu_custom_call.1} parent=39 // pred_check_branch
          %603 = sbr.rel (%p601) target = $region48
        $region47: #{tpu_custom_call.1} parent=39 // pred_region
          %s604 = sand.u32 %s36, 1
          %s605 = scalar_lea.sflag [#allocation11], %s604
          %s606 = sand.u32 %s178, 1
          %s607 = scalar_lea.vmem [#allocation10], %s606
          %s609 = ssub.s32 16, 16
          %610 = vsyncadd %s605, %s609
          %s611 = smul.addr %s44, 16
          %s612 = scalar_lea.hbm %s5, %s611
          %s614 = sshll.u32 %s607, 4
          %s615 = int_to_ptr.vmem [resolvable:$true] %s614
          %617 = dma.hbm_to_vmem [thread:$0]  %s612, 16, %s615, %s605
        $region48: #{tpu_custom_call.1} parent=39 // pred_fallthru
          _
        // Predicated region
        $region49: #{tpu_custom_call.1} parent=39 // pred_check
          %p618 = pneg %p214
        $region50: #{tpu_custom_call.1} parent=39 // pred_check_branch
          %620 = sbr.rel (%p618) target = $region52
        $region51: #{tpu_custom_call.1} parent=39 // pred_region
          %p621 = scmp.lt.s32.totalorder %s44, 1
          %s622 = scalar_select %p621, %s44, 1
          %s623 = smul.addr %s622, 4
          %s624 = smul.addr %s623, 4
          %s625 = scalar_lea.vmem %s6, %s624
        $region52: #{tpu_custom_call.1} parent=39 // pred_fallthru
          _
        // Predicated region
        $region53: #{tpu_custom_call.1} parent=39 // pred_check
          %p626 = pneg %p240
        $region54: #{tpu_custom_call.1} parent=39 // pred_check_branch
          %628 = sbr.rel (%p626) target = $region56
        $region55: #{tpu_custom_call.1} parent=39 // pred_region
          %s629 = sand.u32 %s36, 1
          %s630 = scalar_lea.sflag [#allocation11], %s629
          %s631 = sand.u32 %s230, 1
          %s632 = scalar_lea.vmem [#allocation12], %s631
          %s634 = ssub.s32 16, 16
          %635 = vsyncadd %s630, %s634
          %s636 = smul.addr %s44, 16
          %s637 = scalar_lea.hbm %s7, %s636
          %s639 = sshll.u32 %s632, 4
          %s640 = int_to_ptr.vmem [resolvable:$true] %s639
          %642 = dma.hbm_to_vmem [thread:$0]  %s637, 16, %s640, %s630
        $region56: #{tpu_custom_call.1} parent=39 // pred_fallthru
          _
        // Predicated region
        $region57: #{tpu_custom_call.1} parent=39 // pred_check
          %p643 = pneg %p266
        $region58: #{tpu_custom_call.1} parent=39 // pred_check_branch
          %645 = sbr.rel (%p643) target = $region60
        $region59: #{tpu_custom_call.1} parent=39 // pred_region
          %s646 = sand.u32 %s36, 1
          %s647 = scalar_lea.sflag [#allocation14], %s646
          %s648 = sand.u32 %s256, 1
          %s649 = scalar_lea.vmem [#allocation13], %s648
          %s651 = ssub.s32 16, 16
          %652 = vsyncadd %s647, %s651
          %s653 = smul.addr %s44, 16
          %s654 = scalar_lea.hbm %s8, %s653
          %s656 = sshll.u32 %s649, 4
          %s657 = int_to_ptr.vmem [resolvable:$true] %s656
          %659 = dma.hbm_to_vmem [thread:$0]  %s654, 16, %s657, %s647
        $region60: #{tpu_custom_call.1} parent=39 // pred_fallthru
          _
        // Predicated region
        $region61: #{tpu_custom_call.1} parent=39 // pred_check
          %p660 = pneg %p292
        $region62: #{tpu_custom_call.1} parent=39 // pred_check_branch
          %662 = sbr.rel (%p660) target = $region64
        $region63: #{tpu_custom_call.1} parent=39 // pred_region
          %s663 = sand.u32 %s36, 1
          %s664 = scalar_lea.sflag [#allocation14], %s663
          %s665 = sand.u32 %s282, 1
          %s666 = scalar_lea.vmem [#allocation15], %s665
          %s668 = ssub.s32 16, 16
          %669 = vsyncadd %s664, %s668
          %s670 = smul.addr %s44, 16
          %s671 = scalar_lea.hbm %s9, %s670
          %s673 = sshll.u32 %s666, 4
          %s674 = int_to_ptr.vmem [resolvable:$true] %s673
          %676 = dma.hbm_to_vmem [thread:$0]  %s671, 16, %s674, %s664
        $region64: #{tpu_custom_call.1} parent=39 // pred_fallthru
          _
        // Predicated region
        $region65: #{tpu_custom_call.1} parent=39 // pred_check
          %p677 = pneg %p318
        $region66: #{tpu_custom_call.1} parent=39 // pred_check_branch
          %679 = sbr.rel (%p677) target = $region68
        $region67: #{tpu_custom_call.1} parent=39 // pred_region
          %p680 = scmp.lt.s32.totalorder %s44, 1
          %s681 = scalar_select %p680, %s44, 1
          %s682 = smul.addr %s681, 4
          %s683 = smul.addr %s682, 4
          %s684 = scalar_lea.vmem %s10, %s683
        $region68: #{tpu_custom_call.1} parent=39 // pred_fallthru
          _
        // Predicated region
        $region69: #{tpu_custom_call.1} parent=39 // pred_check
          %p685 = pneg %p344
        $region70: #{tpu_custom_call.1} parent=39 // pred_check_branch
          %687 = sbr.rel (%p685) target = $region72
        $region71: #{tpu_custom_call.1} parent=39 // pred_region
          %s688 = sand.u32 %s36, 1
          %s689 = scalar_lea.sflag [#allocation17], %s688
          %s690 = sand.u32 %s334, 1
          %s691 = scalar_lea.vmem [#allocation16], %s690
          %s693 = ssub.s32 16, 16
          %694 = vsyncadd %s689, %s693
          %s695 = smul.addr %s44, 16
          %s696 = scalar_lea.hbm %s11, %s695
          %s698 = sshll.u32 %s691, 4
          %s699 = int_to_ptr.vmem [resolvable:$true] %s698
          %701 = dma.hbm_to_vmem [thread:$0]  %s696, 16, %s699, %s689
        $region72: #{tpu_custom_call.1} parent=39 // pred_fallthru
          _
        // Predicated region
        $region73: #{tpu_custom_call.1} parent=39 // pred_check
          %p702 = pneg %p370
        $region74: #{tpu_custom_call.1} parent=39 // pred_check_branch
          %704 = sbr.rel (%p702) target = $region76
        $region75: #{tpu_custom_call.1} parent=39 // pred_region
          %p705 = scmp.lt.s32.totalorder %s44, 1
          %s706 = scalar_select %p705, %s44, 1
          %s707 = smul.addr %s706, 8
          %s708 = smul.addr %s707, 4
          %s709 = scalar_lea.vmem %s12, %s708
        $region76: #{tpu_custom_call.1} parent=39 // pred_fallthru
          _
        // Predicated region
        $region77: #{tpu_custom_call.1} parent=39 // pred_check
          %p710 = pneg %p396
        $region78: #{tpu_custom_call.1} parent=39 // pred_check_branch
          %712 = sbr.rel (%p710) target = $region80
        $region79: #{tpu_custom_call.1} parent=39 // pred_region
          %s713 = sand.u32 %s36, 1
          %s714 = scalar_lea.sflag [#allocation17], %s713
          %s715 = sand.u32 %s386, 1
          %s716 = scalar_lea.vmem [#allocation18], %s715
          %s718 = ssub.s32 16, 16
          %719 = vsyncadd %s714, %s718
          %s720 = smul.addr %s44, 16
          %s721 = scalar_lea.hbm %s13, %s720
          %s723 = sshll.u32 %s716, 4
          %s724 = int_to_ptr.vmem [resolvable:$true] %s723
          %726 = dma.hbm_to_vmem [thread:$0]  %s721, 16, %s724, %s714
        $region80: #{tpu_custom_call.1} parent=39 // pred_fallthru
          _
        // Predicated region
        $region81: #{tpu_custom_call.1} parent=39 // pred_check
          %p727 = pneg %p422
        $region82: #{tpu_custom_call.1} parent=39 // pred_check_branch
          %729 = sbr.rel (%p727) target = $region84
        $region83: #{tpu_custom_call.1} parent=39 // pred_region
          %p730 = scmp.lt.s32.totalorder %s44, 1
          %s731 = scalar_select %p730, %s44, 1
          %s732 = scalar_lea.vmem %s14, %s731
        $region84: #{tpu_custom_call.1} parent=39 // pred_fallthru
          _
        // Predicated region
        $region85: #{tpu_custom_call.1} parent=39 // pred_check
          %p733 = pneg %p448
        $region86: #{tpu_custom_call.1} parent=39 // pred_check_branch
          %735 = sbr.rel (%p733) target = $region88
        $region87: #{tpu_custom_call.1} parent=39 // pred_region
          %p736 = scmp.lt.s32.totalorder %s44, 1
          %s737 = scalar_select %p736, %s44, 1
          %s738 = scalar_lea.vmem %s15, %s737
        $region88: #{tpu_custom_call.1} parent=39 // pred_fallthru
          _
      $region40: #{tpu_custom_call.1} parent=5 // pred_fallthru
        _
      %p739 = scmp.le.s32.totalorder 1, %s36
      %p740 = scmp.lt.s32.totalorder %s36, 3
      %p741 = pnand %p739, %p740
      %p742 = pneg %p741
      // Predicated region
      $region89: #{tpu_custom_call.1} parent=5 // pred_check
        _
      $region90: #{tpu_custom_call.1} parent=5 // pred_check_branch
        %744 = sbr.rel (%p741) target = $region92
      $region91: #{tpu_custom_call.1} parent=5 // pred_region
        %s745 = ssub.s32 %s36, 1
        // Predicated region
        $region93: #{tpu_custom_call.1} parent=91 // pred_check
          %p746 = pneg %p74
        $region94: #{tpu_custom_call.1} parent=91 // pred_check_branch
          %748 = sbr.rel (%p746) target = $region96
        $region95: #{tpu_custom_call.1} parent=91 // pred_region
          %749 = dma.done [#allocation5], 256
        $region96: #{tpu_custom_call.1} parent=91 // pred_fallthru
          _
        // Predicated region
        $region97: #{tpu_custom_call.1} parent=91 // pred_check
          %p750 = pneg %p100
        $region98: #{tpu_custom_call.1} parent=91 // pred_check_branch
          %752 = sbr.rel (%p750) target = $region100
        $region99: #{tpu_custom_call.1} parent=91 // pred_region
          %753 = dma.done [#allocation8], 32
        $region100: #{tpu_custom_call.1} parent=91 // pred_fallthru
          _
        // Predicated region
        $region101: #{tpu_custom_call.1} parent=91 // pred_check
          %p754 = pneg %p142
        $region102: #{tpu_custom_call.1} parent=91 // pred_check_branch
          %756 = sbr.rel (%p754) target = $region104
        $region103: #{tpu_custom_call.1} parent=91 // pred_region
          %757 = dma.done [#allocation8], 16
        $region104: #{tpu_custom_call.1} parent=91 // pred_fallthru
          _
        %s758 = sand.u32 %s41, 1
        %s759 = scalar_lea.sflag [#allocation11], %s758
        %s760 = sand.u32 %s181, 1
        %s761 = scalar_lea.vmem [#allocation10], %s760
        // Predicated region
        $region105: #{tpu_custom_call.1} parent=91 // pred_check
          %p762 = pneg %p194
        $region106: #{tpu_custom_call.1} parent=91 // pred_check_branch
          %764 = sbr.rel (%p762) target = $region108
        $region107: #{tpu_custom_call.1} parent=91 // pred_region
          %765 = dma.done %s759, 16
        $region108: #{tpu_custom_call.1} parent=91 // pred_fallthru
          _
        %s766 = sand.u32 %s41, 1
        %s767 = scalar_lea.sflag [#allocation11], %s766
        %s768 = sand.u32 %s233, 1
        %s769 = scalar_lea.vmem [#allocation12], %s768
        // Predicated region
        $region109: #{tpu_custom_call.1} parent=91 // pred_check
          %p770 = pneg %p246
        $region110: #{tpu_custom_call.1} parent=91 // pred_check_branch
          %772 = sbr.rel (%p770) target = $region112
        $region111: #{tpu_custom_call.1} parent=91 // pred_region
          %773 = dma.done %s767, 16
        $region112: #{tpu_custom_call.1} parent=91 // pred_fallthru
          _
        %s774 = sand.u32 %s41, 1
        %s775 = scalar_lea.sflag [#allocation14], %s774
        %s776 = sand.u32 %s259, 1
        %s777 = scalar_lea.vmem [#allocation13], %s776
        // Predicated region
        $region113: #{tpu_custom_call.1} parent=91 // pred_check
          %p778 = pneg %p272
        $region114: #{tpu_custom_call.1} parent=91 // pred_check_branch
          %780 = sbr.rel (%p778) target = $region116
        $region115: #{tpu_custom_call.1} parent=91 // pred_region
          %781 = dma.done %s775, 16
        $region116: #{tpu_custom_call.1} parent=91 // pred_fallthru
          _
        %s782 = sand.u32 %s41, 1
        %s783 = scalar_lea.sflag [#allocation14], %s782
        %s784 = sand.u32 %s285, 1
        %s785 = scalar_lea.vmem [#allocation15], %s784
        // Predicated region
        $region117: #{tpu_custom_call.1} parent=91 // pred_check
          %p786 = pneg %p298
        $region118: #{tpu_custom_call.1} parent=91 // pred_check_branch
          %788 = sbr.rel (%p786) target = $region120
        $region119: #{tpu_custom_call.1} parent=91 // pred_region
          %789 = dma.done %s783, 16
        $region120: #{tpu_custom_call.1} parent=91 // pred_fallthru
          _
        %s790 = sand.u32 %s41, 1
        %s791 = scalar_lea.sflag [#allocation17], %s790
        %s792 = sand.u32 %s337, 1
        %s793 = scalar_lea.vmem [#allocation16], %s792
        // Predicated region
        $region121: #{tpu_custom_call.1} parent=91 // pred_check
          %p794 = pneg %p350
        $region122: #{tpu_custom_call.1} parent=91 // pred_check_branch
          %796 = sbr.rel (%p794) target = $region124
        $region123: #{tpu_custom_call.1} parent=91 // pred_region
          %797 = dma.done %s791, 16
        $region124: #{tpu_custom_call.1} parent=91 // pred_fallthru
          _
        %s798 = sand.u32 %s41, 1
        %s799 = scalar_lea.sflag [#allocation17], %s798
        %s800 = sand.u32 %s389, 1
        %s801 = scalar_lea.vmem [#allocation18], %s800
        // Predicated region
        $region125: #{tpu_custom_call.1} parent=91 // pred_check
          %p802 = pneg %p402
        $region126: #{tpu_custom_call.1} parent=91 // pred_check_branch
          %804 = sbr.rel (%p802) target = $region128
        $region127: #{tpu_custom_call.1} parent=91 // pred_region
          %805 = dma.done %s799, 16
        $region128: #{tpu_custom_call.1} parent=91 // pred_fallthru
          _
        %p806 = pneg %p74
        %p807 = pneg %p71
        %p808 = pneg %p100
        %p809 = pneg %p97
        %p810 = pneg %p121
        %p811 = pneg %p118
        %p812 = pneg %p142
        %p813 = pneg %p139
        %p814 = scmp.lt.s32.totalorder %s46, 1
        %s815 = scalar_select %p814, %s46, 1
        %s816 = smul.addr %s815, 4
        %s817 = smul.addr %s816, 4
        %s818 = scalar_lea.vmem %s4, %s817
        %p819 = pneg %p168
        %p820 = pneg %p165
        %s821 = sand.u32 %s41, 1
        %s822 = scalar_lea.sflag [#allocation11], %s821
        %s823 = sand.u32 %s181, 1
        %s824 = scalar_lea.vmem [#allocation10], %s823
        %p825 = pneg %p194
        %p826 = pneg %p191
        %p827 = scmp.lt.s32.totalorder %s46, 1
        %s828 = scalar_select %p827, %s46, 1
        %s829 = smul.addr %s828, 4
        %s830 = smul.addr %s829, 4
        %s831 = scalar_lea.vmem %s6, %s830
        %p832 = pneg %p220
        %p833 = pneg %p217
        %s834 = sand.u32 %s41, 1
        %s835 = scalar_lea.sflag [#allocation11], %s834
        %s836 = sand.u32 %s233, 1
        %s837 = scalar_lea.vmem [#allocation12], %s836
        %p838 = pneg %p246
        %p839 = pneg %p243
        %s840 = sand.u32 %s41, 1
        %s841 = scalar_lea.sflag [#allocation14], %s840
        %s842 = sand.u32 %s259, 1
        %s843 = scalar_lea.vmem [#allocation13], %s842
        %p844 = pneg %p272
        %p845 = pneg %p269
        %s846 = sand.u32 %s41, 1
        %s847 = scalar_lea.sflag [#allocation14], %s846
        %s848 = sand.u32 %s285, 1
        %s849 = scalar_lea.vmem [#allocation15], %s848
        %p850 = pneg %p298
        %p851 = pneg %p295
        %p852 = scmp.lt.s32.totalorder %s46, 1
        %s853 = scalar_select %p852, %s46, 1
        %s854 = smul.addr %s853, 4
        %s855 = smul.addr %s854, 4
        %s856 = scalar_lea.vmem %s10, %s855
        %p857 = pneg %p324
        %p858 = pneg %p321
        %s859 = sand.u32 %s41, 1
        %s860 = scalar_lea.sflag [#allocation17], %s859
        %s861 = sand.u32 %s337, 1
        %s862 = scalar_lea.vmem [#allocation16], %s861
        %p863 = pneg %p350
        %p864 = pneg %p347
        %p865 = scmp.lt.s32.totalorder %s46, 1
        %s866 = scalar_select %p865, %s46, 1
        %s867 = smul.addr %s866, 8
        %s868 = smul.addr %s867, 4
        %s869 = scalar_lea.vmem %s12, %s868
        %p870 = pneg %p376
        %p871 = pneg %p373
        %s872 = sand.u32 %s41, 1
        %s873 = scalar_lea.sflag [#allocation17], %s872
        %s874 = sand.u32 %s389, 1
        %s875 = scalar_lea.vmem [#allocation18], %s874
        %p876 = pneg %p402
        %p877 = pneg %p399
        %p878 = scmp.lt.s32.totalorder %s46, 1
        %s879 = scalar_select %p878, %s46, 1
        %s880 = scalar_lea.vmem %s14, %s879
        %p881 = pneg %p428
        %p882 = pneg %p425
        %p883 = scmp.lt.s32.totalorder %s46, 1
        %s884 = scalar_select %p883, %s46, 1
        %s885 = scalar_lea.vmem %s15, %s884
        %p886 = pneg %p454
        %p887 = pneg %p451
        %p888 = pneg %p475
        %p889 = pneg %p472
        %p890 = pneg %p496
        %p891 = pneg %p493
        %p892 = pneg %p522
        %p893 = pneg %p519
        %s894 = smul.u32 2, %s45
        %s895 = smul.u32 2, %s45
        %p896 = scmp.lt.s32.totalorder %s46, 1
        %s897 = scalar_select %p896, %s46, 1
        %s898 = smul.addr %s897, 4
        %s899 = smul.addr %s898, 4
        %s900 = scalar_lea.vmem %s4, %s899
        %p901 = scmp.lt.s32.totalorder %s46, 1
        %s902 = scalar_select %p901, %s46, 1
        %s903 = smul.addr %s902, 4
        %s904 = smul.addr %s903, 4
        %s905 = scalar_lea.vmem %s6, %s904
        %p906 = scmp.lt.s32.totalorder %s46, 1
        %s907 = scalar_select %p906, %s46, 1
        %s908 = smul.addr %s907, 4
        %s909 = smul.addr %s908, 4
        %s910 = scalar_lea.vmem %s10, %s909
        %p911 = scmp.lt.s32.totalorder %s46, 1
        %s912 = scalar_select %p911, %s46, 1
        %s913 = smul.addr %s912, 8
        %s914 = smul.addr %s913, 4
        %s915 = scalar_lea.vmem %s12, %s914
        %p916 = scmp.lt.s32.totalorder %s46, 1
        %s917 = scalar_select %p916, %s46, 1
        %s918 = scalar_lea.vmem %s14, %s917
        %p919 = scmp.lt.s32.totalorder %s46, 1
        %s920 = scalar_select %p919, %s46, 1
        %s921 = scalar_lea.vmem %s15, %s920
        %p923 = scmp.eq.s32.totalorder %s46, 0
        // Predicated region
        $region129: #{tpu_custom_call.1} parent=91 // pred_check
          %p924 = pneg %p923
        $region130: #{tpu_custom_call.1} parent=91 // pred_check_branch
          %926 = sbr.rel (%p924) target = $region132
        $region131: #{tpu_custom_call.1} parent=91 // pred_region
          %v927 = vld [vmem:[#allocation4] sm:$0xff]
          %v928 = vld [vmem:[#allocation4 + $0x8] sm:$0xff]
          %v929 = vld [vmem:[%s2] sm:$0x1]
          %v930 = vld [vmem:[#allocation9] sm:$0x1]
          %vm931 = vcmask 261120
          %v932 = vsel %vm931, %v927, 0.0
          %933 = vadd.xlane.f32.xlu0 %v932
          %v934 = vpop.xlane.xlu0 %933
          %v935 = vsel %vm931, %v928, 0.0
          %936 = vadd.xlane.f32.xlu0 %v935
          %v937 = vpop.xlane.xlu0 %936
          %v938 = vrcp.pop 32.0
          %v939 = vmul.f32 %v934, %v938
          %v940 = vmul.f32 %v937, %v938
          %v941 = vsub.f32 %v927, %v939
          %v942 = vsub.f32 %v928, %v940
          %v943 = vmul.f32 %v941, %v941
          %v944 = vmul.f32 %v942, %v942
          %v945 = vsel %vm931, %v943, 0.0
          %946 = vadd.xlane.f32.xlu0 %v945
          %v947 = vpop.xlane.xlu0 %946
          %v948 = vsel %vm931, %v944, 0.0
          %949 = vadd.xlane.f32.xlu0 %v948
          %v950 = vpop.xlane.xlu0 %949
          %v951 = vmul.f32 %v947, %v938
          %v952 = vmul.f32 %v950, %v938
          %v953 = vadd.f32 %v951, 1e-12
          %v954 = vadd.f32 %v952, 1e-12
          %v955 = vrsqrt.pop %v953
          %v956 = vrsqrt.pop %v954
          %v957 = vmul.f32 %v941, %v955
          %v958 = vmul.f32 %v942, %v956
          %v960 = vlaneseq
          %v961 = vshrl.u32 %v960, 7
          %v962 = vsub.s32 0, %v961
          %v963 = vrot.slane %v929, %v962
          %v965 = vmul.f32 %v957, %v963
          %v966 = vmul.f32 %v958, %v963
          %v968 = vlaneseq
          %v969 = vshrl.u32 %v968, 7
          %v970 = vsub.s32 0, %v969
          %v971 = vrot.slane %v930, %v970
          %v973 = vadd.f32 %v965, %v971
          %v974 = vadd.f32 %v966, %v971
          %975 = vst.msk [vmem:[#allocation2] sm:$0xff] %vm931, %v973
          %976 = vst.msk [vmem:[#allocation2 + $0x8] sm:$0xff] %vm931, %v974
        $region132: #{tpu_custom_call.1} parent=91 // pred_fallthru
          _
        %v977 = vld [vmem:[#allocation2] sm:$0xff]
        %v978 = vld [vmem:[#allocation2 + $0x8] sm:$0xff]
        %v979 = vld [vmem:[#allocation7] sm:$0x1]
        %v980 = vld [vmem:[#allocation7 + $0x1] sm:$0x1]
        %v981 = vsub.f32 1.0, %v979
        %v982 = vsub.f32 1.0, %v980
        %v983 = vmul.f32 %v981, -10000.0
        %v984 = vmul.f32 %v982, -10000.0
        %v985 = vpack.c.bf16 %v978, %v977
        %v986 = vld [vmem:[%s900] sm:$0xf]
        %v987 = vld [vmem:[%s900 + $0x4] sm:$0xf]
        %v988 = vld [vmem:[%s900 + $0x8] sm:$0xf]
        %v989 = vld [vmem:[%s900 + $0xc] sm:$0xf]
        %v990 = vld [vmem:[%s761] sm:$0x1]
        %v992 = vlaneseq
        %v993 = vshrl.u32 %v992, 7
        %v994 = vsub.s32 0, %v993
        %v995 = vrot.slane %v990, %v994
        %v1001 = vunpack.c.l.b16 %v986
        %v1002 = vunpack.c.l.b16 %v987
        %v1003 = vunpack.c.l.b16 %v988
        %v1004 = vunpack.c.l.b16 %v989
        %v1005 = vpack.c.b16 %v1002, %v1001
        %v1006 = vpack.c.b16 %v1004, %v1003
        %vm1009 = vcmask 261120
        %v1011 = vsel %vm1009, %v985, 0
        %1013 = vmatprep.subr.bf16.mxu0 0
        %1014 = vmatpush1.bf16.msra.mxu0 %v1005
        %1015 = vmatprep.subr.bf16.mxu0 0
        %1016 = vmatpush1.bf16.msra.mxu0 %v1006
        %1017 = vmatprep.subr.bf16.mxu0 0
        %1018 = vmatpush1.bf16.msra.mxu0 0
        %1019 = vmatprep.subr.bf16.mxu0 0
        %1020 = vmatpush1.bf16.msra.mxu0 0
        %1021 = vmatprep.subr.bf16.mxu0 0
        %1022 = vmatpush1.bf16.msra.mxu0 0
        %1023 = vmatprep.subr.bf16.mxu0 0
        %1024 = vmatpush1.bf16.msra.mxu0 0
        %1025 = vmatprep.subr.bf16.mxu0 0
        %1026 = vmatpush1.bf16.msra.mxu0 0
        %1027 = vmatprep.subr.bf16.mxu0 0
        %1028 = vmatpush1.bf16.msra.mxu0 0
        %1029 = vmatprep.subr.bf16.mxu0 0
        %1030 = vmatpush1.bf16.msra.mxu0 0
        %1031 = vmatprep.subr.bf16.mxu0 0
        %1032 = vmatpush1.bf16.msra.mxu0 0
        %1033 = vmatprep.subr.bf16.mxu0 0
        %1034 = vmatpush1.bf16.msra.mxu0 0
        %1035 = vmatprep.subr.bf16.mxu0 0
        %1036 = vmatpush1.bf16.msra.mxu0 0
        %1037 = vmatprep.subr.bf16.mxu0 0
        %1038 = vmatpush1.bf16.msra.mxu0 0
        %1039 = vmatprep.subr.bf16.mxu0 0
        %1040 = vmatpush1.bf16.msra.mxu0 0
        %1041 = vmatprep.subr.bf16.mxu0 0
        %1042 = vmatpush1.bf16.msra.mxu0 0
        %1043 = vmatprep.subr.bf16.mxu0 0
        %1044 = vmatpush1.bf16.msra.mxu0 0
        %1045 = vmatprep.mubr.bf16.mxu0 0
        %1046 = vmatmul.mubr.bf16.gmra.mrb[0].mxu0 %v1011
        %v1047 = vpop.f32.mrb[0].mxu0
        %v1048 = vadd.f32 %v995, %v1047
        %v1049 = vpop.f32.mrb[0].mxu0
        %v1050 = vpop.f32.mrb[0].mxu0
        %v1051 = vadd.f32 %v995, %v1050
        %v1052 = vpop.f32.mrb[0].mxu0
        %1053 = vdwg.mxu0
        %v1054 = vpack.c.bf16 %v1048, %v1048
        %v1055 = vpack.c.bf16 %v1051, %v1051
        %1057 = vrot.lane.b32.xlu0 %v1054, 96
        %v1058 = vpop.permute.xlu0 %1057
        %vm1059 = vcmask 130048
        %v1061 = vsel %vm1059, %v1054, 0
        %v1064 = vsel %vm1059, %v1058, 0
        %1066 = vmatprep.subr.bf16.mxu0 0
        %1067 = vmatpush1.bf16.xpose.msra.mxu0 %v1064
        %1068 = vmatprep.subr.bf16.mxu0 0
        %1069 = vmatpush1.bf16.xpose.msra.mxu0 0
        %1070 = vmatprep.subr.bf16.mxu0 0
        %1071 = vmatpush1.bf16.xpose.msra.mxu0 0
        %1072 = vmatprep.subr.bf16.mxu0 0
        %1073 = vmatpush1.bf16.xpose.msra.mxu0 0
        %1074 = vmatprep.subr.bf16.mxu0 0
        %1075 = vmatpush1.bf16.xpose.msra.mxu0 0
        %1076 = vmatprep.subr.bf16.mxu0 0
        %1077 = vmatpush1.bf16.xpose.msra.mxu0 0
        %1078 = vmatprep.subr.bf16.mxu0 0
        %1079 = vmatpush1.bf16.xpose.msra.mxu0 0
        %1080 = vmatprep.subr.bf16.mxu0 0
        %1081 = vmatpush1.bf16.xpose.msra.mxu0 0
        %1082 = vmatprep.subr.bf16.mxu0 0
        %1083 = vmatpush1.bf16.xpose.msra.mxu0 0
        %1084 = vmatprep.subr.bf16.mxu0 0
        %1085 = vmatpush1.bf16.xpose.msra.mxu0 0
        %1086 = vmatprep.subr.bf16.mxu0 0
        %1087 = vmatpush1.bf16.xpose.msra.mxu0 0
        %1088 = vmatprep.subr.bf16.mxu0 0
        %1089 = vmatpush1.bf16.xpose.msra.mxu0 0
        %1090 = vmatprep.subr.bf16.mxu0 0
        %1091 = vmatpush1.bf16.xpose.msra.mxu0 0
        %1092 = vmatprep.subr.bf16.mxu0 0
        %1093 = vmatpush1.bf16.xpose.msra.mxu0 0
        %1094 = vmatprep.subr.bf16.mxu0 0
        %1095 = vmatpush1.bf16.xpose.msra.mxu0 0
        %1096 = vmatprep.subr.bf16.mxu0 0
        %1097 = vmatpush1.bf16.xpose.msra.mxu0 0
        %1098 = vmatprep.mubr.bf16.mxu0 0
        %1099 = vmatmul.mubr.bf16.gmra.mrb[0].mxu0 %v1061
        %v1100 = vpop.f32.mrb[0].mxu0
        %v1101 = vadd.f32 0.0, %v1100
        %v1102 = vpop.f32.mrb[0].mxu0
        %v1103 = vpop.f32.mrb[0].mxu0
        %v1104 = vpop.f32.mrb[0].mxu0
        %1105 = vdwg.mxu0
        %1107 = vrot.lane.b32.xlu0 %v1055, 96
        %v1108 = vpop.permute.xlu0 %1107
        %v1110 = vsel %vm1059, %v1055, 0
        %v1113 = vsel %vm1059, %v1108, 0
        %1115 = vmatprep.subr.bf16.mxu0 0
        %1116 = vmatpush1.bf16.xpose.msra.mxu0 %v1113
        %1117 = vmatprep.subr.bf16.mxu0 0
        %1118 = vmatpush1.bf16.xpose.msra.mxu0 0
        %1119 = vmatprep.subr.bf16.mxu0 0
        %1120 = vmatpush1.bf16.xpose.msra.mxu0 0
        %1121 = vmatprep.subr.bf16.mxu0 0
        %1122 = vmatpush1.bf16.xpose.msra.mxu0 0
        %1123 = vmatprep.subr.bf16.mxu0 0
        %1124 = vmatpush1.bf16.xpose.msra.mxu0 0
        %1125 = vmatprep.subr.bf16.mxu0 0
        %1126 = vmatpush1.bf16.xpose.msra.mxu0 0
        %1127 = vmatprep.subr.bf16.mxu0 0
        %1128 = vmatpush1.bf16.xpose.msra.mxu0 0
        %1129 = vmatprep.subr.bf16.mxu0 0
        %1130 = vmatpush1.bf16.xpose.msra.mxu0 0
        %1131 = vmatprep.subr.bf16.mxu0 0
        %1132 = vmatpush1.bf16.xpose.msra.mxu0 0
        %1133 = vmatprep.subr.bf16.mxu0 0
        %1134 = vmatpush1.bf16.xpose.msra.mxu0 0
        %1135 = vmatprep.subr.bf16.mxu0 0
        %1136 = vmatpush1.bf16.xpose.msra.mxu0 0
        %1137 = vmatprep.subr.bf16.mxu0 0
        %1138 = vmatpush1.bf16.xpose.msra.mxu0 0
        %1139 = vmatprep.subr.bf16.mxu0 0
        %1140 = vmatpush1.bf16.xpose.msra.mxu0 0
        %1141 = vmatprep.subr.bf16.mxu0 0
        %1142 = vmatpush1.bf16.xpose.msra.mxu0 0
        %1143 = vmatprep.subr.bf16.mxu0 0
        %1144 = vmatpush1.bf16.xpose.msra.mxu0 0
        %1145 = vmatprep.subr.bf16.mxu0 0
        %1146 = vmatpush1.bf16.xpose.msra.mxu0 0
        %1147 = vmatprep.mubr.bf16.mxu0 0
        %1148 = vmatmul.mubr.bf16.gmra.mrb[0].mxu0 %v1110
        %v1149 = vpop.f32.mrb[0].mxu0
        %v1150 = vadd.f32 0.0, %v1149
        %v1151 = vpop.f32.mrb[0].mxu0
        %v1152 = vpop.f32.mrb[0].mxu0
        %v1153 = vpop.f32.mrb[0].mxu0
        %1154 = vdwg.mxu0
        %v1155 = vmul.f32 %v1101, 0.25
        %v1156 = vmul.f32 %v1150, 0.25
        %v1159 = vlaneseq
        %v1160 = vshrl.u32 %v1159, 7
        %v1161 = vsub.s32 0, %v1160
        %v1162 = vrot.slane %v983, %v1161
        %v1163 = vlaneseq
        %v1164 = vshrl.u32 %v1163, 7
        %v1165 = vsub.s32 0, %v1164
        %v1166 = vrot.slane %v984, %v1165
        %v1169 = vadd.f32 %v1155, %v1162
        %v1170 = vadd.f32 %v1156, %v1166
        %vm1171 = vcmask 64512
        %v1172 = vsel %vm1171, %v1169, -inf
        %1173 = vmax.xlane.f32.xlu0 %v1172
        %v1174 = vpop.xlane.xlu0 %1173
        %v1175 = vsel %vm1171, %v1170, -inf
        %1176 = vmax.xlane.f32.xlu0 %v1175
        %v1177 = vpop.xlane.xlu0 %1176
        %v1178 = vsub.f32 %v1169, %v1174
        %v1179 = vsub.f32 %v1170, %v1177
        %v1180 = vmul.f32 %v1178, 1.442695
        %v1181 = vpow.pop %v1180
        %v1182 = vmul.f32 %v1179, 1.442695
        %v1183 = vpow.pop %v1182
        %v1184 = vsel %vm1171, %v1181, 0.0
        %1185 = vadd.xlane.f32.xlu0 %v1184
        %v1186 = vpop.xlane.xlu0 %1185
        %v1187 = vsel %vm1171, %v1183, 0.0
        %1188 = vadd.xlane.f32.xlu0 %v1187
        %v1189 = vpop.xlane.xlu0 %1188
        %v1190 = vrcp.pop %v1186
        %v1191 = vrcp.pop %v1189
        %v1192 = vmul.f32 %v1181, %v1190
        %v1193 = vmul.f32 %v1183, %v1191
        %v1194 = vpack.c.bf16 %v1192, %v1192
        %v1195 = vpack.c.bf16 %v1193, %v1193
        %1196 = vrot.lane.b32.xlu0 %v1054, 64
        %v1197 = vpop.permute.xlu0 %1196
        %v1199 = vsel %vm1171, %v1194, 0
        %vm1201 = vcmask 1043456
        %v1203 = vsel %vm1201, %v1197, 0
        %1205 = vmatprep.subr.bf16.mxu0 0
        %1206 = vmatpush1.bf16.msra.mxu0 %v1203
        %1207 = vmatprep.subr.bf16.mxu0 0
        %1208 = vmatpush1.bf16.msra.mxu0 0
        %1209 = vmatprep.subr.bf16.mxu0 0
        %1210 = vmatpush1.bf16.msra.mxu0 0
        %1211 = vmatprep.subr.bf16.mxu0 0
        %1212 = vmatpush1.bf16.msra.mxu0 0
        %1213 = vmatprep.subr.bf16.mxu0 0
        %1214 = vmatpush1.bf16.msra.mxu0 0
        %1215 = vmatprep.subr.bf16.mxu0 0
        %1216 = vmatpush1.bf16.msra.mxu0 0
        %1217 = vmatprep.subr.bf16.mxu0 0
        %1218 = vmatpush1.bf16.msra.mxu0 0
        %1219 = vmatprep.subr.bf16.mxu0 0
        %1220 = vmatpush1.bf16.msra.mxu0 0
        %1221 = vmatprep.subr.bf16.mxu0 0
        %1222 = vmatpush1.bf16.msra.mxu0 0
        %1223 = vmatprep.subr.bf16.mxu0 0
        %1224 = vmatpush1.bf16.msra.mxu0 0
        %1225 = vmatprep.subr.bf16.mxu0 0
        %1226 = vmatpush1.bf16.msra.mxu0 0
        %1227 = vmatprep.subr.bf16.mxu0 0
        %1228 = vmatpush1.bf16.msra.mxu0 0
        %1229 = vmatprep.subr.bf16.mxu0 0
        %1230 = vmatpush1.bf16.msra.mxu0 0
        %1231 = vmatprep.subr.bf16.mxu0 0
        %1232 = vmatpush1.bf16.msra.mxu0 0
        %1233 = vmatprep.subr.bf16.mxu0 0
        %1234 = vmatpush1.bf16.msra.mxu0 0
        %1235 = vmatprep.subr.bf16.mxu0 0
        %1236 = vmatpush1.bf16.msra.mxu0 0
        %1237 = vmatprep.mubr.bf16.mxu0 0
        %1238 = vmatmul.mubr.bf16.gmra.mrb[0].mxu0 %v1199
        %v1239 = vpop.f32.mrb[0].mxu0
        %v1240 = vadd.f32 0.0, %v1239
        %v1241 = vpop.f32.mrb[0].mxu0
        %v1242 = vpop.f32.mrb[0].mxu0
        %v1243 = vpop.f32.mrb[0].mxu0
        %1244 = vdwg.mxu0
        %1245 = vrot.lane.b32.xlu0 %v1055, 64
        %v1246 = vpop.permute.xlu0 %1245
        %v1248 = vsel %vm1171, %v1195, 0
        %v1251 = vsel %vm1201, %v1246, 0
        %1253 = vmatprep.subr.bf16.mxu0 0
        %1254 = vmatpush1.bf16.msra.mxu0 %v1251
        %1255 = vmatprep.subr.bf16.mxu0 0
        %1256 = vmatpush1.bf16.msra.mxu0 0
        %1257 = vmatprep.subr.bf16.mxu0 0
        %1258 = vmatpush1.bf16.msra.mxu0 0
        %1259 = vmatprep.subr.bf16.mxu0 0
        %1260 = vmatpush1.bf16.msra.mxu0 0
        %1261 = vmatprep.subr.bf16.mxu0 0
        %1262 = vmatpush1.bf16.msra.mxu0 0
        %1263 = vmatprep.subr.bf16.mxu0 0
        %1264 = vmatpush1.bf16.msra.mxu0 0
        %1265 = vmatprep.subr.bf16.mxu0 0
        %1266 = vmatpush1.bf16.msra.mxu0 0
        %1267 = vmatprep.subr.bf16.mxu0 0
        %1268 = vmatpush1.bf16.msra.mxu0 0
        %1269 = vmatprep.subr.bf16.mxu0 0
        %1270 = vmatpush1.bf16.msra.mxu0 0
        %1271 = vmatprep.subr.bf16.mxu0 0
        %1272 = vmatpush1.bf16.msra.mxu0 0
        %1273 = vmatprep.subr.bf16.mxu0 0
        %1274 = vmatpush1.bf16.msra.mxu0 0
        %1275 = vmatprep.subr.bf16.mxu0 0
        %1276 = vmatpush1.bf16.msra.mxu0 0
        %1277 = vmatprep.subr.bf16.mxu0 0
        %1278 = vmatpush1.bf16.msra.mxu0 0
        %1279 = vmatprep.subr.bf16.mxu0 0
        %1280 = vmatpush1.bf16.msra.mxu0 0
        %1281 = vmatprep.subr.bf16.mxu0 0
        %1282 = vmatpush1.bf16.msra.mxu0 0
        %1283 = vmatprep.subr.bf16.mxu0 0
        %1284 = vmatpush1.bf16.msra.mxu0 0
        %1285 = vmatprep.mubr.bf16.mxu0 0
        %1286 = vmatmul.mubr.bf16.gmra.mrb[0].mxu0 %v1248
        %v1287 = vpop.f32.mrb[0].mxu0
        %v1288 = vadd.f32 0.0, %v1287
        %v1289 = vpop.f32.mrb[0].mxu0
        %v1290 = vpop.f32.mrb[0].mxu0
        %v1291 = vpop.f32.mrb[0].mxu0
        %1292 = vdwg.mxu0
        %1293 = vst.msk [vmem:[#allocation3] sm:$0xff] %vm1059, %v1240
        %1294 = vst.msk [vmem:[#allocation3 + $0x8] sm:$0xff] %vm1059, %v1288
        %1295 = vrot.lane.b32.xlu0 %v1054, 112
        %v1296 = vpop.permute.xlu0 %1295
        %1297 = vrot.lane.b32.xlu0 %v1054, 80
        %v1298 = vpop.permute.xlu0 %1297
        %v1300 = vsel %vm1059, %v1296, 0
        %v1303 = vsel %vm1059, %v1298, 0
        %1305 = vmatprep.subr.bf16.mxu0 0
        %1306 = vmatpush1.bf16.xpose.msra.mxu0 %v1303
        %1307 = vmatprep.subr.bf16.mxu0 0
        %1308 = vmatpush1.bf16.xpose.msra.mxu0 0
        %1309 = vmatprep.subr.bf16.mxu0 0
        %1310 = vmatpush1.bf16.xpose.msra.mxu0 0
        %1311 = vmatprep.subr.bf16.mxu0 0
        %1312 = vmatpush1.bf16.xpose.msra.mxu0 0
        %1313 = vmatprep.subr.bf16.mxu0 0
        %1314 = vmatpush1.bf16.xpose.msra.mxu0 0
        %1315 = vmatprep.subr.bf16.mxu0 0
        %1316 = vmatpush1.bf16.xpose.msra.mxu0 0
        %1317 = vmatprep.subr.bf16.mxu0 0
        %1318 = vmatpush1.bf16.xpose.msra.mxu0 0
        %1319 = vmatprep.subr.bf16.mxu0 0
        %1320 = vmatpush1.bf16.xpose.msra.mxu0 0
        %1321 = vmatprep.subr.bf16.mxu0 0
        %1322 = vmatpush1.bf16.xpose.msra.mxu0 0
        %1323 = vmatprep.subr.bf16.mxu0 0
        %1324 = vmatpush1.bf16.xpose.msra.mxu0 0
        %1325 = vmatprep.subr.bf16.mxu0 0
        %1326 = vmatpush1.bf16.xpose.msra.mxu0 0
        %1327 = vmatprep.subr.bf16.mxu0 0
        %1328 = vmatpush1.bf16.xpose.msra.mxu0 0
        %1329 = vmatprep.subr.bf16.mxu0 0
        %1330 = vmatpush1.bf16.xpose.msra.mxu0 0
        %1331 = vmatprep.subr.bf16.mxu0 0
        %1332 = vmatpush1.bf16.xpose.msra.mxu0 0
        %1333 = vmatprep.subr.bf16.mxu0 0
        %1334 = vmatpush1.bf16.xpose.msra.mxu0 0
        %1335 = vmatprep.subr.bf16.mxu0 0
        %1336 = vmatpush1.bf16.xpose.msra.mxu0 0
        %1337 = vmatprep.mubr.bf16.mxu0 0
        %1338 = vmatmul.mubr.bf16.gmra.mrb[0].mxu0 %v1300
        %v1339 = vpop.f32.mrb[0].mxu0
        %v1340 = vadd.f32 0.0, %v1339
        %v1341 = vpop.f32.mrb[0].mxu0
        %v1342 = vpop.f32.mrb[0].mxu0
        %v1343 = vpop.f32.mrb[0].mxu0
        %1344 = vdwg.mxu0
        %1345 = vrot.lane.b32.xlu0 %v1055, 112
        %v1346 = vpop.permute.xlu0 %1345
        %1347 = vrot.lane.b32.xlu0 %v1055, 80
        %v1348 = vpop.permute.xlu0 %1347
        %v1350 = vsel %vm1059, %v1346, 0
        %v1353 = vsel %vm1059, %v1348, 0
        %1355 = vmatprep.subr.bf16.mxu0 0
        %1356 = vmatpush1.bf16.xpose.msra.mxu0 %v1353
        %1357 = vmatprep.subr.bf16.mxu0 0
        %1358 = vmatpush1.bf16.xpose.msra.mxu0 0
        %1359 = vmatprep.subr.bf16.mxu0 0
        %1360 = vmatpush1.bf16.xpose.msra.mxu0 0
        %1361 = vmatprep.subr.bf16.mxu0 0
        %1362 = vmatpush1.bf16.xpose.msra.mxu0 0
        %1363 = vmatprep.subr.bf16.mxu0 0
        %1364 = vmatpush1.bf16.xpose.msra.mxu0 0
        %1365 = vmatprep.subr.bf16.mxu0 0
        %1366 = vmatpush1.bf16.xpose.msra.mxu0 0
        %1367 = vmatprep.subr.bf16.mxu0 0
        %1368 = vmatpush1.bf16.xpose.msra.mxu0 0
        %1369 = vmatprep.subr.bf16.mxu0 0
        %1370 = vmatpush1.bf16.xpose.msra.mxu0 0
        %1371 = vmatprep.subr.bf16.mxu0 0
        %1372 = vmatpush1.bf16.xpose.msra.mxu0 0
        %1373 = vmatprep.subr.bf16.mxu0 0
        %1374 = vmatpush1.bf16.xpose.msra.mxu0 0
        %1375 = vmatprep.subr.bf16.mxu0 0
        %1376 = vmatpush1.bf16.xpose.msra.mxu0 0
        %1377 = vmatprep.subr.bf16.mxu0 0
        %1378 = vmatpush1.bf16.xpose.msra.mxu0 0
        %1379 = vmatprep.subr.bf16.mxu0 0
        %1380 = vmatpush1.bf16.xpose.msra.mxu0 0
        %1381 = vmatprep.subr.bf16.mxu0 0
        %1382 = vmatpush1.bf16.xpose.msra.mxu0 0
        %1383 = vmatprep.subr.bf16.mxu0 0
        %1384 = vmatpush1.bf16.xpose.msra.mxu0 0
        %1385 = vmatprep.subr.bf16.mxu0 0
        %1386 = vmatpush1.bf16.xpose.msra.mxu0 0
        %1387 = vmatprep.mubr.bf16.mxu0 0
        %1388 = vmatmul.mubr.bf16.gmra.mrb[0].mxu0 %v1350
        %v1389 = vpop.f32.mrb[0].mxu0
        %v1390 = vadd.f32 0.0, %v1389
        %v1391 = vpop.f32.mrb[0].mxu0
        %v1392 = vpop.f32.mrb[0].mxu0
        %v1393 = vpop.f32.mrb[0].mxu0
        %1394 = vdwg.mxu0
        %v1395 = vmul.f32 %v1340, 0.25
        %v1396 = vmul.f32 %v1390, 0.25
        %v1397 = vadd.f32 %v1395, %v1162
        %v1398 = vadd.f32 %v1396, %v1166
        %v1399 = vsel %vm1171, %v1397, -inf
        %1400 = vmax.xlane.f32.xlu0 %v1399
        %v1401 = vpop.xlane.xlu0 %1400
        %v1402 = vsel %vm1171, %v1398, -inf
        %1403 = vmax.xlane.f32.xlu0 %v1402
        %v1404 = vpop.xlane.xlu0 %1403
        %v1405 = vsub.f32 %v1397, %v1401
        %v1406 = vsub.f32 %v1398, %v1404
        %v1407 = vmul.f32 %v1405, 1.442695
        %v1408 = vpow.pop %v1407
        %v1409 = vmul.f32 %v1406, 1.442695
        %v1410 = vpow.pop %v1409
        %v1411 = vsel %vm1171, %v1408, 0.0
        %1412 = vadd.xlane.f32.xlu0 %v1411
        %v1413 = vpop.xlane.xlu0 %1412
        %v1414 = vsel %vm1171, %v1410, 0.0
        %1415 = vadd.xlane.f32.xlu0 %v1414
        %v1416 = vpop.xlane.xlu0 %1415
        %v1417 = vrcp.pop %v1413
        %v1418 = vrcp.pop %v1416
        %v1419 = vmul.f32 %v1408, %v1417
        %v1420 = vmul.f32 %v1410, %v1418
        %v1421 = vpack.c.bf16 %v1419, %v1419
        %v1422 = vpack.c.bf16 %v1420, %v1420
        %1423 = vrot.lane.b32.xlu0 %v1054, 48
        %v1424 = vpop.permute.xlu0 %1423
        %v1426 = vsel %vm1171, %v1421, 0
        %v1429 = vsel %vm1201, %v1424, 0
        %1431 = vmatprep.subr.bf16.mxu0 0
        %1432 = vmatpush1.bf16.msra.mxu0 %v1429
        %1433 = vmatprep.subr.bf16.mxu0 0
        %1434 = vmatpush1.bf16.msra.mxu0 0
        %1435 = vmatprep.subr.bf16.mxu0 0
        %1436 = vmatpush1.bf16.msra.mxu0 0
        %1437 = vmatprep.subr.bf16.mxu0 0
        %1438 = vmatpush1.bf16.msra.mxu0 0
        %1439 = vmatprep.subr.bf16.mxu0 0
        %1440 = vmatpush1.bf16.msra.mxu0 0
        %1441 = vmatprep.subr.bf16.mxu0 0
        %1442 = vmatpush1.bf16.msra.mxu0 0
        %1443 = vmatprep.subr.bf16.mxu0 0
        %1444 = vmatpush1.bf16.msra.mxu0 0
        %1445 = vmatprep.subr.bf16.mxu0 0
        %1446 = vmatpush1.bf16.msra.mxu0 0
        %1447 = vmatprep.subr.bf16.mxu0 0
        %1448 = vmatpush1.bf16.msra.mxu0 0
        %1449 = vmatprep.subr.bf16.mxu0 0
        %1450 = vmatpush1.bf16.msra.mxu0 0
        %1451 = vmatprep.subr.bf16.mxu0 0
        %1452 = vmatpush1.bf16.msra.mxu0 0
        %1453 = vmatprep.subr.bf16.mxu0 0
        %1454 = vmatpush1.bf16.msra.mxu0 0
        %1455 = vmatprep.subr.bf16.mxu0 0
        %1456 = vmatpush1.bf16.msra.mxu0 0
        %1457 = vmatprep.subr.bf16.mxu0 0
        %1458 = vmatpush1.bf16.msra.mxu0 0
        %1459 = vmatprep.subr.bf16.mxu0 0
        %1460 = vmatpush1.bf16.msra.mxu0 0
        %1461 = vmatprep.subr.bf16.mxu0 0
        %1462 = vmatpush1.bf16.msra.mxu0 0
        %1463 = vmatprep.mubr.bf16.mxu0 0
        %1464 = vmatmul.mubr.bf16.gmra.mrb[0].mxu0 %v1426
        %v1465 = vpop.f32.mrb[0].mxu0
        %v1466 = vadd.f32 0.0, %v1465
        %v1467 = vpop.f32.mrb[0].mxu0
        %v1468 = vpop.f32.mrb[0].mxu0
        %v1469 = vpop.f32.mrb[0].mxu0
        %1470 = vdwg.mxu0
        %1471 = vrot.lane.b32.xlu0 %v1055, 48
        %v1472 = vpop.permute.xlu0 %1471
        %v1474 = vsel %vm1171, %v1422, 0
        %v1477 = vsel %vm1201, %v1472, 0
        %1479 = vmatprep.subr.bf16.mxu0 0
        %1480 = vmatpush1.bf16.msra.mxu0 %v1477
        %1481 = vmatprep.subr.bf16.mxu0 0
        %1482 = vmatpush1.bf16.msra.mxu0 0
        %1483 = vmatprep.subr.bf16.mxu0 0
        %1484 = vmatpush1.bf16.msra.mxu0 0
        %1485 = vmatprep.subr.bf16.mxu0 0
        %1486 = vmatpush1.bf16.msra.mxu0 0
        %1487 = vmatprep.subr.bf16.mxu0 0
        %1488 = vmatpush1.bf16.msra.mxu0 0
        %1489 = vmatprep.subr.bf16.mxu0 0
        %1490 = vmatpush1.bf16.msra.mxu0 0
        %1491 = vmatprep.subr.bf16.mxu0 0
        %1492 = vmatpush1.bf16.msra.mxu0 0
        %1493 = vmatprep.subr.bf16.mxu0 0
        %1494 = vmatpush1.bf16.msra.mxu0 0
        %1495 = vmatprep.subr.bf16.mxu0 0
        %1496 = vmatpush1.bf16.msra.mxu0 0
        %1497 = vmatprep.subr.bf16.mxu0 0
        %1498 = vmatpush1.bf16.msra.mxu0 0
        %1499 = vmatprep.subr.bf16.mxu0 0
        %1500 = vmatpush1.bf16.msra.mxu0 0
        %1501 = vmatprep.subr.bf16.mxu0 0
        %1502 = vmatpush1.bf16.msra.mxu0 0
        %1503 = vmatprep.subr.bf16.mxu0 0
        %1504 = vmatpush1.bf16.msra.mxu0 0
        %1505 = vmatprep.subr.bf16.mxu0 0
        %1506 = vmatpush1.bf16.msra.mxu0 0
        %1507 = vmatprep.subr.bf16.mxu0 0
        %1508 = vmatpush1.bf16.msra.mxu0 0
        %1509 = vmatprep.subr.bf16.mxu0 0
        %1510 = vmatpush1.bf16.msra.mxu0 0
        %1511 = vmatprep.mubr.bf16.mxu0 0
        %1512 = vmatmul.mubr.bf16.gmra.mrb[0].mxu0 %v1474
        %v1513 = vpop.f32.mrb[0].mxu0
        %v1514 = vadd.f32 0.0, %v1513
        %v1515 = vpop.f32.mrb[0].mxu0
        %v1516 = vpop.f32.mrb[0].mxu0
        %v1517 = vpop.f32.mrb[0].mxu0
        %1518 = vdwg.mxu0
        %1521 = vrot.lane.b32.xlu0 %v1466, 16
        %v1522 = vpop.permute.xlu0 %1521
        %1523 = vrot.lane.b32.xlu0 %v1514, 16
        %v1524 = vpop.permute.xlu0 %1523
        %vm1527 = vcmask 261248
        %1528 = vst.msk [vmem:[#allocation3] sm:$0xff] %vm1527, %v1522
        %1529 = vst.msk [vmem:[#allocation3 + $0x8] sm:$0xff] %vm1527, %v1524
        %v1530 = vld [vmem:[#allocation3] sm:$0xff]
        %v1531 = vld [vmem:[#allocation3 + $0x8] sm:$0xff]
        %v1532 = vpack.c.bf16 %v1531, %v1530
        %v1533 = vld [vmem:[%s905] sm:$0xf]
        %v1534 = vld [vmem:[%s905 + $0x4] sm:$0xf]
        %v1535 = vld [vmem:[%s905 + $0x8] sm:$0xf]
        %v1536 = vld [vmem:[%s905 + $0xc] sm:$0xf]
        %v1537 = vld [vmem:[%s769] sm:$0x1]
        %v1539 = vlaneseq
        %v1540 = vshrl.u32 %v1539, 7
        %v1541 = vsub.s32 0, %v1540
        %v1542 = vrot.slane %v1537, %v1541
        %v1548 = vunpack.c.l.b16 %v1533
        %v1549 = vunpack.c.l.b16 %v1534
        %v1550 = vunpack.c.l.b16 %v1535
        %v1551 = vunpack.c.l.b16 %v1536
        %v1552 = vpack.c.b16 %v1549, %v1548
        %v1553 = vpack.c.b16 %v1551, %v1550
        %v1557 = vsel %vm1009, %v1532, 0
        %1559 = vmatprep.subr.bf16.mxu0 0
        %1560 = vmatpush1.bf16.msra.mxu0 %v1552
        %1561 = vmatprep.subr.bf16.mxu0 0
        %1562 = vmatpush1.bf16.msra.mxu0 %v1553
        %1563 = vmatprep.subr.bf16.mxu0 0
        %1564 = vmatpush1.bf16.msra.mxu0 0
        %1565 = vmatprep.subr.bf16.mxu0 0
        %1566 = vmatpush1.bf16.msra.mxu0 0
        %1567 = vmatprep.subr.bf16.mxu0 0
        %1568 = vmatpush1.bf16.msra.mxu0 0
        %1569 = vmatprep.subr.bf16.mxu0 0
        %1570 = vmatpush1.bf16.msra.mxu0 0
        %1571 = vmatprep.subr.bf16.mxu0 0
        %1572 = vmatpush1.bf16.msra.mxu0 0
        %1573 = vmatprep.subr.bf16.mxu0 0
        %1574 = vmatpush1.bf16.msra.mxu0 0
        %1575 = vmatprep.subr.bf16.mxu0 0
        %1576 = vmatpush1.bf16.msra.mxu0 0
        %1577 = vmatprep.subr.bf16.mxu0 0
        %1578 = vmatpush1.bf16.msra.mxu0 0
        %1579 = vmatprep.subr.bf16.mxu0 0
        %1580 = vmatpush1.bf16.msra.mxu0 0
        %1581 = vmatprep.subr.bf16.mxu0 0
        %1582 = vmatpush1.bf16.msra.mxu0 0
        %1583 = vmatprep.subr.bf16.mxu0 0
        %1584 = vmatpush1.bf16.msra.mxu0 0
        %1585 = vmatprep.subr.bf16.mxu0 0
        %1586 = vmatpush1.bf16.msra.mxu0 0
        %1587 = vmatprep.subr.bf16.mxu0 0
        %1588 = vmatpush1.bf16.msra.mxu0 0
        %1589 = vmatprep.subr.bf16.mxu0 0
        %1590 = vmatpush1.bf16.msra.mxu0 0
        %1591 = vmatprep.mubr.bf16.mxu0 0
        %1592 = vmatmul.mubr.bf16.gmra.mrb[0].mxu0 %v1557
        %v1593 = vpop.f32.mrb[0].mxu0
        %v1594 = vadd.f32 %v1542, %v1593
        %v1595 = vpop.f32.mrb[0].mxu0
        %v1596 = vpop.f32.mrb[0].mxu0
        %v1597 = vadd.f32 %v1542, %v1596
        %v1598 = vpop.f32.mrb[0].mxu0
        %1599 = vdwg.mxu0
        %v1600 = vadd.f32 %v977, %v1594
        %v1601 = vadd.f32 %v978, %v1597
        %v1602 = vld [vmem:[%s777] sm:$0x1]
        %v1603 = vld [vmem:[%s785] sm:$0x1]
        %v1604 = vsel %vm1009, %v1600, 0.0
        %1605 = vadd.xlane.f32.xlu0 %v1604
        %v1606 = vpop.xlane.xlu0 %1605
        %v1607 = vsel %vm1009, %v1601, 0.0
        %1608 = vadd.xlane.f32.xlu0 %v1607
        %v1609 = vpop.xlane.xlu0 %1608
        %v1610 = vrcp.pop 32.0
        %v1611 = vmul.f32 %v1606, %v1610
        %v1612 = vmul.f32 %v1609, %v1610
        %v1613 = vsub.f32 %v1600, %v1611
        %v1614 = vsub.f32 %v1601, %v1612
        %v1615 = vmul.f32 %v1613, %v1613
        %v1616 = vmul.f32 %v1614, %v1614
        %v1617 = vsel %vm1009, %v1615, 0.0
        %1618 = vadd.xlane.f32.xlu0 %v1617
        %v1619 = vpop.xlane.xlu0 %1618
        %v1620 = vsel %vm1009, %v1616, 0.0
        %1621 = vadd.xlane.f32.xlu0 %v1620
        %v1622 = vpop.xlane.xlu0 %1621
        %v1623 = vmul.f32 %v1619, %v1610
        %v1624 = vmul.f32 %v1622, %v1610
        %v1625 = vadd.f32 %v1623, 1e-12
        %v1626 = vadd.f32 %v1624, 1e-12
        %v1627 = vrsqrt.pop %v1625
        %v1628 = vrsqrt.pop %v1626
        %v1629 = vmul.f32 %v1613, %v1627
        %v1630 = vmul.f32 %v1614, %v1628
        %v1632 = vlaneseq
        %v1633 = vshrl.u32 %v1632, 7
        %v1634 = vsub.s32 0, %v1633
        %v1635 = vrot.slane %v1602, %v1634
        %v1637 = vmul.f32 %v1629, %v1635
        %v1638 = vmul.f32 %v1630, %v1635
        %v1640 = vlaneseq
        %v1641 = vshrl.u32 %v1640, 7
        %v1642 = vsub.s32 0, %v1641
        %v1643 = vrot.slane %v1603, %v1642
        %v1645 = vadd.f32 %v1637, %v1643
        %v1646 = vadd.f32 %v1638, %v1643
        %v1647 = vpack.c.bf16 %v1646, %v1645
        %v1648 = vld [vmem:[%s910] sm:$0xf]
        %v1649 = vld [vmem:[%s910 + $0x4] sm:$0xf]
        %v1650 = vld [vmem:[%s910 + $0x8] sm:$0xf]
        %v1651 = vld [vmem:[%s910 + $0xc] sm:$0xf]
        %v1652 = vld [vmem:[%s793] sm:$0x1]
        %v1654 = vlaneseq
        %v1655 = vshrl.u32 %v1654, 7
        %v1656 = vsub.s32 0, %v1655
        %v1657 = vrot.slane %v1652, %v1656
        %v1663 = vunpack.c.l.b16 %v1648
        %v1664 = vunpack.c.l.b16 %v1649
        %v1665 = vunpack.c.l.b16 %v1650
        %v1666 = vunpack.c.l.b16 %v1651
        %v1667 = vpack.c.b16 %v1664, %v1663
        %v1668 = vpack.c.b16 %v1666, %v1665
        %v1672 = vsel %vm1009, %v1647, 0
        %1674 = vmatprep.subr.bf16.mxu0 0
        %1675 = vmatpush1.bf16.msra.mxu0 %v1667
        %1676 = vmatprep.subr.bf16.mxu0 0
        %1677 = vmatpush1.bf16.msra.mxu0 %v1668
        %1678 = vmatprep.subr.bf16.mxu0 0
        %1679 = vmatpush1.bf16.msra.mxu0 0
        %1680 = vmatprep.subr.bf16.mxu0 0
        %1681 = vmatpush1.bf16.msra.mxu0 0
        %1682 = vmatprep.subr.bf16.mxu0 0
        %1683 = vmatpush1.bf16.msra.mxu0 0
        %1684 = vmatprep.subr.bf16.mxu0 0
        %1685 = vmatpush1.bf16.msra.mxu0 0
        %1686 = vmatprep.subr.bf16.mxu0 0
        %1687 = vmatpush1.bf16.msra.mxu0 0
        %1688 = vmatprep.subr.bf16.mxu0 0
        %1689 = vmatpush1.bf16.msra.mxu0 0
        %1690 = vmatprep.subr.bf16.mxu0 0
        %1691 = vmatpush1.bf16.msra.mxu0 0
        %1692 = vmatprep.subr.bf16.mxu0 0
        %1693 = vmatpush1.bf16.msra.mxu0 0
        %1694 = vmatprep.subr.bf16.mxu0 0
        %1695 = vmatpush1.bf16.msra.mxu0 0
        %1696 = vmatprep.subr.bf16.mxu0 0
        %1697 = vmatpush1.bf16.msra.mxu0 0
        %1698 = vmatprep.subr.bf16.mxu0 0
        %1699 = vmatpush1.bf16.msra.mxu0 0
        %1700 = vmatprep.subr.bf16.mxu0 0
        %1701 = vmatpush1.bf16.msra.mxu0 0
        %1702 = vmatprep.subr.bf16.mxu0 0
        %1703 = vmatpush1.bf16.msra.mxu0 0
        %1704 = vmatprep.subr.bf16.mxu0 0
        %1705 = vmatpush1.bf16.msra.mxu0 0
        %1706 = vmatprep.mubr.bf16.mxu0 0
        %1707 = vmatmul.mubr.bf16.gmra.mrb[0].mxu0 %v1672
        %v1708 = vpop.f32.mrb[0].mxu0
        %v1709 = vadd.f32 %v1657, %v1708
        %v1710 = vpop.f32.mrb[0].mxu0
        %v1711 = vpop.f32.mrb[0].mxu0
        %v1712 = vadd.f32 %v1657, %v1711
        %v1713 = vpop.f32.mrb[0].mxu0
        %1714 = vdwg.mxu0
        %v1715 = vmul.f32 %v1709, 0.5
        %v1716 = vmul.f32 %v1712, 0.5
        %v1717 = vmul.f32 %v1709, 0.044715
        %v1718 = vmul.f32 %v1712, 0.044715
        %v1719 = vmul.f32 %v1717, %v1709
        %v1720 = vmul.f32 %v1718, %v1712
        %v1721 = vmul.f32 %v1719, %v1709
        %v1722 = vmul.f32 %v1720, %v1712
        %v1723 = vadd.f32 %v1709, %v1721
        %v1724 = vadd.f32 %v1712, %v1722
        %v1725 = vmul.f32 %v1723, 0.7978846
        %v1726 = vmul.f32 %v1724, 0.7978846
        %v1727 = vtanh.pop %v1725
        %v1728 = vtanh.pop %v1726
        %v1729 = vadd.f32 %v1727, 1.0
        %v1730 = vadd.f32 %v1728, 1.0
        %v1731 = vmul.f32 %v1715, %v1729
        %v1732 = vmul.f32 %v1716, %v1730
        %v1733 = vpack.c.bf16 %v1732, %v1731
        %v1734 = vld [vmem:[%s915] sm:$0xf]
        %v1735 = vld [vmem:[%s915 + $0x4] sm:$0xf]
        %v1736 = vld [vmem:[%s915 + $0x8] sm:$0xf]
        %v1737 = vld [vmem:[%s915 + $0xc] sm:$0xf]
        %v1738 = vld [vmem:[%s915 + $0x10] sm:$0xf]
        %v1739 = vld [vmem:[%s915 + $0x14] sm:$0xf]
        %v1740 = vld [vmem:[%s915 + $0x18] sm:$0xf]
        %v1741 = vld [vmem:[%s915 + $0x1c] sm:$0xf]
        %v1742 = vld [vmem:[%s801] sm:$0x1]
        %v1744 = vlaneseq
        %v1745 = vshrl.u32 %v1744, 7
        %v1746 = vsub.s32 0, %v1745
        %v1747 = vrot.slane %v1742, %v1746
        %v1757 = vunpack.c.l.b16 %v1734
        %v1758 = vunpack.c.l.b16 %v1735
        %v1759 = vunpack.c.l.b16 %v1736
        %v1760 = vunpack.c.l.b16 %v1737
        %v1761 = vunpack.c.l.b16 %v1738
        %v1762 = vunpack.c.l.b16 %v1739
        %v1763 = vunpack.c.l.b16 %v1740
        %v1764 = vunpack.c.l.b16 %v1741
        %v1765 = vpack.c.b16 %v1758, %v1757
        %v1766 = vpack.c.b16 %v1760, %v1759
        %v1767 = vpack.c.b16 %v1762, %v1761
        %v1768 = vpack.c.b16 %v1764, %v1763
        %vm1773 = vcmask 523264
        %v1775 = vsel %vm1773, %v1733, 0
        %1777 = vmatprep.subr.bf16.mxu0 0
        %1778 = vmatpush1.bf16.msra.mxu0 %v1765
        %1779 = vmatprep.subr.bf16.mxu0 0
        %1780 = vmatpush1.bf16.msra.mxu0 %v1766
        %1781 = vmatprep.subr.bf16.mxu0 0
        %1782 = vmatpush1.bf16.msra.mxu0 %v1767
        %1783 = vmatprep.subr.bf16.mxu0 0
        %1784 = vmatpush1.bf16.msra.mxu0 %v1768
        %1785 = vmatprep.subr.bf16.mxu0 0
        %1786 = vmatpush1.bf16.msra.mxu0 0
        %1787 = vmatprep.subr.bf16.mxu0 0
        %1788 = vmatpush1.bf16.msra.mxu0 0
        %1789 = vmatprep.subr.bf16.mxu0 0
        %1790 = vmatpush1.bf16.msra.mxu0 0
        %1791 = vmatprep.subr.bf16.mxu0 0
        %1792 = vmatpush1.bf16.msra.mxu0 0
        %1793 = vmatprep.subr.bf16.mxu0 0
        %1794 = vmatpush1.bf16.msra.mxu0 0
        %1795 = vmatprep.subr.bf16.mxu0 0
        %1796 = vmatpush1.bf16.msra.mxu0 0
        %1797 = vmatprep.subr.bf16.mxu0 0
        %1798 = vmatpush1.bf16.msra.mxu0 0
        %1799 = vmatprep.subr.bf16.mxu0 0
        %1800 = vmatpush1.bf16.msra.mxu0 0
        %1801 = vmatprep.subr.bf16.mxu0 0
        %1802 = vmatpush1.bf16.msra.mxu0 0
        %1803 = vmatprep.subr.bf16.mxu0 0
        %1804 = vmatpush1.bf16.msra.mxu0 0
        %1805 = vmatprep.subr.bf16.mxu0 0
        %1806 = vmatpush1.bf16.msra.mxu0 0
        %1807 = vmatprep.subr.bf16.mxu0 0
        %1808 = vmatpush1.bf16.msra.mxu0 0
        %1809 = vmatprep.mubr.bf16.mxu0 0
        %1810 = vmatmul.mubr.bf16.gmra.mrb[0].mxu0 %v1775
        %v1811 = vpop.f32.mrb[0].mxu0
        %v1812 = vadd.f32 %v1747, %v1811
        %v1813 = vpop.f32.mrb[0].mxu0
        %v1814 = vpop.f32.mrb[0].mxu0
        %v1815 = vadd.f32 %v1747, %v1814
        %v1816 = vpop.f32.mrb[0].mxu0
        %1817 = vdwg.mxu0
        %v1818 = vadd.f32 %v1645, %v1812
        %v1819 = vadd.f32 %v1646, %v1815
        %v1820 = vld [vmem:[%s918] sm:$0x1]
        %v1821 = vld [vmem:[%s921] sm:$0x1]
        %v1822 = vsel %vm1009, %v1818, 0.0
        %1823 = vadd.xlane.f32.xlu0 %v1822
        %v1824 = vpop.xlane.xlu0 %1823
        %v1825 = vsel %vm1009, %v1819, 0.0
        %1826 = vadd.xlane.f32.xlu0 %v1825
        %v1827 = vpop.xlane.xlu0 %1826
        %v1828 = vmul.f32 %v1824, %v1610
        %v1829 = vmul.f32 %v1827, %v1610
        %v1830 = vsub.f32 %v1818, %v1828
        %v1831 = vsub.f32 %v1819, %v1829
        %v1832 = vmul.f32 %v1830, %v1830
        %v1833 = vmul.f32 %v1831, %v1831
        %v1834 = vsel %vm1009, %v1832, 0.0
        %1835 = vadd.xlane.f32.xlu0 %v1834
        %v1836 = vpop.xlane.xlu0 %1835
        %v1837 = vsel %vm1009, %v1833, 0.0
        %1838 = vadd.xlane.f32.xlu0 %v1837
        %v1839 = vpop.xlane.xlu0 %1838
        %v1840 = vmul.f32 %v1836, %v1610
        %v1841 = vmul.f32 %v1839, %v1610
        %v1842 = vadd.f32 %v1840, 1e-12
        %v1843 = vadd.f32 %v1841, 1e-12
        %v1844 = vrsqrt.pop %v1842
        %v1845 = vrsqrt.pop %v1843
        %v1846 = vmul.f32 %v1830, %v1844
        %v1847 = vmul.f32 %v1831, %v1845
        %v1849 = vlaneseq
        %v1850 = vshrl.u32 %v1849, 7
        %v1851 = vsub.s32 0, %v1850
        %v1852 = vrot.slane %v1820, %v1851
        %v1854 = vmul.f32 %v1846, %v1852
        %v1855 = vmul.f32 %v1847, %v1852
        %v1857 = vlaneseq
        %v1858 = vshrl.u32 %v1857, 7
        %v1859 = vsub.s32 0, %v1858
        %v1860 = vrot.slane %v1821, %v1859
        %v1862 = vadd.f32 %v1854, %v1860
        %v1863 = vadd.f32 %v1855, %v1860
        %1864 = vst.msk [vmem:[#allocation2] sm:$0xff] %vm1009, %v1862
        %1865 = vst.msk [vmem:[#allocation2 + $0x8] sm:$0xff] %vm1009, %v1863
        %p1866 = scmp.eq.s32.totalorder %s46, 1
        // Predicated region
        $region133: #{tpu_custom_call.1} parent=91 // pred_check
          %p1867 = pneg %p1866
        $region134: #{tpu_custom_call.1} parent=91 // pred_check_branch
          %1869 = sbr.rel (%p1867) target = $region136
        $region135: #{tpu_custom_call.1} parent=91 // pred_region
          %v1870 = vpack.c.bf16 %v1862, %v1862
          %v1871 = vpack.c.bf16 %v1863, %v1863
          %v1872 = vld [vmem:[%s16] sm:$0xf]
          %v1873 = vld [vmem:[%s16 + $0x4] sm:$0xf]
          %v1874 = vld [vmem:[%s16 + $0x8] sm:$0xf]
          %v1875 = vld [vmem:[%s16 + $0xc] sm:$0xf]
          %v1876 = vld [vmem:[%s17] sm:$0x1]
          %v1878 = vlaneseq
          %v1879 = vshrl.u32 %v1878, 7
          %v1880 = vsub.s32 0, %v1879
          %v1881 = vrot.slane %v1876, %v1880
          %v1885 = vunpack.c.l.b16 %v1870
          %v1886 = vunpack.c.l.b16 %v1871
          %v1887 = vrot.slane %v1886, 7
          %vm1888 = vcmask 1041409
          %v1889 = vsel %vm1888, %v1887, %v1885
          %v1890 = vpack.c.b16 %v1889, %v1889
          %v1895 = vunpack.c.l.b16 %v1872
          %v1896 = vunpack.c.l.b16 %v1873
          %v1897 = vunpack.c.l.b16 %v1874
          %v1898 = vunpack.c.l.b16 %v1875
          %v1899 = vpack.c.b16 %v1896, %v1895
          %v1900 = vpack.c.b16 %v1898, %v1897
          %v1904 = vsel %vm1009, %v1890, 0
          %1906 = vmatprep.subr.bf16.mxu0 0
          %1907 = vmatpush1.bf16.msra.mxu0 %v1899
          %1908 = vmatprep.subr.bf16.mxu0 0
          %1909 = vmatpush1.bf16.msra.mxu0 %v1900
          %1910 = vmatprep.subr.bf16.mxu0 0
          %1911 = vmatpush1.bf16.msra.mxu0 0
          %1912 = vmatprep.subr.bf16.mxu0 0
          %1913 = vmatpush1.bf16.msra.mxu0 0
          %1914 = vmatprep.subr.bf16.mxu0 0
          %1915 = vmatpush1.bf16.msra.mxu0 0
          %1916 = vmatprep.subr.bf16.mxu0 0
          %1917 = vmatpush1.bf16.msra.mxu0 0
          %1918 = vmatprep.subr.bf16.mxu0 0
          %1919 = vmatpush1.bf16.msra.mxu0 0
          %1920 = vmatprep.subr.bf16.mxu0 0
          %1921 = vmatpush1.bf16.msra.mxu0 0
          %1922 = vmatprep.subr.bf16.mxu0 0
          %1923 = vmatpush1.bf16.msra.mxu0 0
          %1924 = vmatprep.subr.bf16.mxu0 0
          %1925 = vmatpush1.bf16.msra.mxu0 0
          %1926 = vmatprep.subr.bf16.mxu0 0
          %1927 = vmatpush1.bf16.msra.mxu0 0
          %1928 = vmatprep.subr.bf16.mxu0 0
          %1929 = vmatpush1.bf16.msra.mxu0 0
          %1930 = vmatprep.subr.bf16.mxu0 0
          %1931 = vmatpush1.bf16.msra.mxu0 0
          %1932 = vmatprep.subr.bf16.mxu0 0
          %1933 = vmatpush1.bf16.msra.mxu0 0
          %1934 = vmatprep.subr.bf16.mxu0 0
          %1935 = vmatpush1.bf16.msra.mxu0 0
          %1936 = vmatprep.subr.bf16.mxu0 0
          %1937 = vmatpush1.bf16.msra.mxu0 0
          %1938 = vmatprep.mubr.bf16.mxu0 0
          %1939 = vmatmul.mubr.bf16.gmra.mrb[0].mxu0 %v1904
          %v1940 = vpop.f32.mrb[0].mxu0
          %v1941 = vadd.f32 %v1881, %v1940
          %v1942 = vpop.f32.mrb[0].mxu0
          %v1943 = vpop.f32.mrb[0].mxu0
          %v1944 = vpop.f32.mrb[0].mxu0
          %1945 = vdwg.mxu0
          %1946 = vst [vmem:[#allocation19] sm:$0x3] %v1941
        $region136: #{tpu_custom_call.1} parent=91 // pred_fallthru
          _
        // Predicated region
        $region137: #{tpu_custom_call.1} parent=91 // pred_check
          %p1947 = pneg %p519
        $region138: #{tpu_custom_call.1} parent=91 // pred_check_branch
          %1949 = sbr.rel (%p1947) target = $region140
        $region139: #{tpu_custom_call.1} parent=91 // pred_region
          %s1951 = ssub.s32 32, 32
          %1952 = vsyncadd [#allocation6], %s1951
          %s1953 = smul.addr %s45, 32
          %s1954 = scalar_lea.hbm %s18, %s1953
          %s1956 = sshll.u32 [#allocation19], 4
          %s1957 = int_to_ptr.vmem [resolvable:$true] %s1956
          %1959 = dma.vmem_to_hbm [thread:$0]  %s1957, 32, %s1954, [#allocation6]
        $region140: #{tpu_custom_call.1} parent=91 // pred_fallthru
          _
        // Predicated region
        $region141: #{tpu_custom_call.1} parent=91 // pred_check
          %p1960 = pneg %p519
        $region142: #{tpu_custom_call.1} parent=91 // pred_check_branch
          %1962 = sbr.rel (%p1960) target = $region144
        $region143: #{tpu_custom_call.1} parent=91 // pred_region
          %1963 = dma.done [#allocation6], 32
        $region144: #{tpu_custom_call.1} parent=91 // pred_fallthru
          _
      $region92: #{tpu_custom_call.1} parent=5 // pred_fallthru
        _
      %p1964 = scmp.le.s32.totalorder 2, %s36
      // Predicated region
      $region145: #{tpu_custom_call.1} parent=5 // pred_check
        %p1965 = pneg %p1964
      $region146: #{tpu_custom_call.1} parent=5 // pred_check_branch
        %1967 = sbr.rel (%p1965) target = $region148
      $region147: #{tpu_custom_call.1} parent=5 // pred_region
        %s1968 = ssub.s32 %s36, 2
      $region148: #{tpu_custom_call.1} parent=5 // pred_fallthru
        _
    $region6: #{tpu_custom_call.1} parent=1 // loop_footer
      %s40 = sadd.s32 1, %s36
    $region7: #{tpu_custom_call.1} parent=1 // loop_footer_branch
      %35 = sbr.rel target = $region3
    $region8: #{tpu_custom_call.1} parent=1 // loop_exit
      _
    %1969 = vsyncpa [#allocation5], 1
    %s1970 = scalar_lea.sflag [#allocation5], 1
    %1971 = vsyncpa %s1970, 1
    %1972 = vsyncpa [#allocation8], 1
    %1973 = vsyncpa [#allocation11], 1
    %s1974 = scalar_lea.sflag [#allocation11], 1
    %1975 = vsyncpa %s1974, 1
    %1976 = vsyncpa [#allocation14], 1
    %s1977 = scalar_lea.sflag [#allocation14], 1
    %1978 = vsyncpa %s1977, 1
    %1979 = vsyncpa [#allocation17], 1
    %s1980 = scalar_lea.sflag [#allocation17], 1
    %1981 = vsyncpa %s1980, 1
    %1982 = vsyncpa [#allocation6], 1
    %s1983 = scalar_lea.sflag [#allocation6], 1
    %1984 = vsyncpa %s1983, 1

</llo_original>
